<compile_context>
chip_gen: v6e
topology: v6e:2x2x1
jax: 0.10.0
libtpu: 0.0.40
codegen_flags: <defaults>
</compile_context>

<pallas_src>
import functools
import math

import jax
import jax.numpy as jnp
from jax.experimental import pallas as pl
from jax.experimental.pallas import tpu as pltpu

BN_EPS = 1e-5
LANE = 128
_VMEM_LIMIT = 48 * 1024 * 1024
_VMEM_FULL = pl.BlockSpec(memory_space=pltpu.MemorySpace.VMEM)


# ----------------------------- small helpers --------------------------------

def _ceil_to(x, m):
    return ((x + m - 1) // m) * m


def _pad_to(a, size, axis):
    pad = size - a.shape[axis]
    if pad == 0:
        return a
    widths = [(0, 0)] * a.ndim
    widths[axis] = (0, pad)
    return jnp.pad(a, widths)


def _bn_fold(bn):
    scale = bn['gamma'] * jax.lax.rsqrt(bn['var'] + BN_EPS)
    bias = bn['beta'] - bn['mean'] * scale
    return scale, bias


def _make_phases(x_nhwc, stride):
    """Pad H,W by 1 (conv padding=1) and split into stride^2 spatial phases:
    result (N, stride*stride, Hq, Wq, C).  Inside the kernel every 3x3 tap then
    becomes an UNSTRIDED static slice, so stride-2 outputs are computed directly
    (no wasted stride-1 work)."""
    xpad = jnp.pad(x_nhwc, ((0, 0), (1, 1), (1, 1), (0, 0)))
    if stride == 1:
        return xpad[:, None]
    phases = [xpad[:, a::stride, b::stride, :]
              for a in range(stride) for b in range(stride)]
    return jnp.stack(phases, axis=1)


# ----------------------------- Pallas kernels -------------------------------

def _conv1_kernel(xph_ref, w_ref, s_ref, b_ref, o_ref, *, ho, wo):
    """Fused conv1: 3x3 stride-2 conv (9 per-tap MXU matmuls over the tiny Cin)
    + folded BN + ReLU.  One batch element per grid step."""
    coutp = o_ref.shape[-1]
    phases = [xph_ref[p] for p in range(4)]            # each (Hq, Wq, Cin_pad)
    s, b = s_ref[...], b_ref[...]
    if wo % 8 == 0:
        acc = jnp.zeros((ho * wo, coutp), jnp.float32)
        for dy in range(3):
            for dx in range(3):
                ph = phases[(dy % 2) * 2 + (dx % 2)]
                tap = ph[dy // 2:dy // 2 + ho, dx // 2:dx // 2 + wo, :]
                tap = tap.reshape(ho * wo, tap.shape[-1]).astype(jnp.bfloat16)
                acc = acc + jnp.dot(tap, w_ref[dy * 3 + dx],
                                    preferred_element_type=jnp.float32)
        o_ref[...] = jnp.maximum(acc * s + b, 0.0).reshape(ho, wo, coutp)
    else:
        # Generic fallback (per output row) for widths not a multiple of 8.
        for oy in range(ho):
            acc = jnp.zeros((wo, coutp), jnp.float32)
            for dy in range(3):
                for dx in range(3):
                    ph = phases[(dy % 2) * 2 + (dx % 2)]
                    tap = ph[oy + dy // 2, dx // 2:dx // 2 + wo, :]
                    acc = acc + jnp.dot(tap.astype(jnp.bfloat16),
                                        w_ref[dy * 3 + dx],
                                        preferred_element_type=jnp.float32)
            o_ref[oy] = jnp.maximum(acc * s + b, 0.0)


def _dw_block_kernel(xph_ref, wdw_ref, s1_ref, b1_ref, wsep_ref, s2_ref, b2_ref,
                     o_ref, *, stride, ho, wo):
    """Fused DepthWiseBlock: depthwise 3x3 (stride folded into phase indexing)
    + BN + ReLU  ->  1x1 sep conv on the MXU (bf16 in / f32 acc) + BN + ReLU.
    One batch element per grid step; the dw result never leaves VMEM."""
    cinp = xph_ref.shape[-1]
    phases = [xph_ref[p] for p in range(stride * stride)]

    # depthwise 3x3 on the VPU (f32)
    acc = jnp.zeros((ho, wo, cinp), jnp.float32)
    for dy in range(3):
        for dx in range(3):
            ph = phases[(dy % stride) * stride + (dx % stride)]
            oy, ox = dy // stride, dx // stride
            k = dy * 3 + dx
            acc = acc + ph[oy:oy + ho, ox:ox + wo, :] * wdw_ref[k:k + 1, :]
    y = jnp.maximum(acc * s1_ref[...] + b1_ref[...], 0.0)      # (ho, wo, Cinp)

    # 1x1 sep conv on the MXU, fused BN + ReLU, lane-dense store
    wsep = wsep_ref[...]
    s2, b2 = s2_ref[...], b2_ref[...]
    if wo % 8 == 0:
        z = jnp.dot(y.reshape(ho * wo, cinp).astype(jnp.bfloat16), wsep,
                    preferred_element_type=jnp.float32)
        z = jnp.maximum(z * s2 + b2, 0.0)
        o_ref[...] = z.reshape(ho, wo, -1)
    else:
        # tiny spatial sizes (wo in {4,2,1}): one small MXU dot per output row
        for oy in range(ho):
            zr = jnp.dot(y[oy].astype(jnp.bfloat16), wsep,
                         preferred_element_type=jnp.float32)
            o_ref[oy] = jnp.maximum(zr * s2 + b2, 0.0)


def _pool_fc_kernel(x_ref, w_ref, b_ref, o_ref):
    """Fused AdaptiveAvgPool2d(1) + Linear (bf16 MXU operands, f32 accumulate)."""
    pooled = jnp.mean(x_ref[...], axis=1)                       # (N, Cp) f32
    y = jnp.dot(pooled.astype(jnp.bfloat16), w_ref[...],
                preferred_element_type=jnp.float32)
    o_ref[...] = y + b_ref[...]


# ----------------------------- kernel wrappers ------------------------------

def conv1_bn_relu(x, w9, scale, bias):
    """x: (N,H,W,Cin_pad) NHWC; w9: (9, Cin_pad, Cout_pad) bf16."""
    n, h, w, cinp = x.shape
    coutp = w9.shape[-1]
    assert h % 2 == 0 and w % 2 == 0, "even spatial size required for stride 2"
    ho, wo = (h - 1) // 2 + 1, (w - 1) // 2 + 1
    xph = _make_phases(x, 2)
    _, pp, hq, wq, _ = xph.shape
    return pl.pallas_call(
        functools.partial(_conv1_kernel, ho=ho, wo=wo),
        grid=(n,),
        in_specs=[
            pl.BlockSpec((None, pp, hq, wq, cinp), lambda i: (i, 0, 0, 0, 0)),
            pl.BlockSpec((9, cinp, coutp), lambda i: (0, 0, 0)),
            pl.BlockSpec((1, coutp), lambda i: (0, 0)),
            pl.BlockSpec((1, coutp), lambda i: (0, 0)),
        ],
        out_specs=pl.BlockSpec((None, ho, wo, coutp), lambda i: (i, 0, 0, 0)),
        out_shape=jax.ShapeDtypeStruct((n, ho, wo, coutp), jnp.float32),
        compiler_params=pltpu.CompilerParams(
            dimension_semantics=("parallel",),
            vmem_limit_bytes=_VMEM_LIMIT),
    )(xph, w9, scale, bias)


def dw_block(x, wdw, s1, b1, wsep, s2, b2, stride):
    """Fused depthwise-separable block.  x: (N,H,W,Cin_pad) NHWC f32."""
    n, h, w, cinp = x.shape
    coutp = wsep.shape[1]
    if stride == 2:
        assert h % 2 == 0 and w % 2 == 0, "even spatial size required for stride 2"
    ho, wo = (h - 1) // stride + 1, (w - 1) // stride + 1
    xph = _make_phases(x, stride)
    _, pp, hq, wq, _ = xph.shape
    return pl.pallas_call(
        functools.partial(_dw_block_kernel, stride=stride, ho=ho, wo=wo),
        grid=(n,),
        in_specs=[
            pl.BlockSpec((None, pp, hq, wq, cinp), lambda i: (i, 0, 0, 0, 0)),
            pl.BlockSpec((9, cinp), lambda i: (0, 0)),
            pl.BlockSpec((1, cinp), lambda i: (0, 0)),
            pl.BlockSpec((1, cinp), lambda i: (0, 0)),
            pl.BlockSpec((cinp, coutp), lambda i: (0, 0)),
            pl.BlockSpec((1, coutp), lambda i: (0, 0)),
            pl.BlockSpec((1, coutp), lambda i: (0, 0)),
        ],
        out_specs=pl.BlockSpec((None, ho, wo, coutp), lambda i: (i, 0, 0, 0)),
        out_shape=jax.ShapeDtypeStruct((n, ho, wo, coutp), jnp.float32),
        compiler_params=pltpu.CompilerParams(
            dimension_semantics=("parallel",),
            vmem_limit_bytes=_VMEM_LIMIT),
    )(xph, wdw, s1, b1, wsep, s2, b2)


def pool_fc(x, w, b):
    """x: (N, H*W, Cp) f32; w: (Cp, NCp) bf16; b: (1, NCp) f32."""
    n = x.shape[0]
    ncp = w.shape[1]
    return pl.pallas_call(
        _pool_fc_kernel,
        in_specs=[_VMEM_FULL, _VMEM_FULL, _VMEM_FULL],
        out_specs=_VMEM_FULL,
        out_shape=jax.ShapeDtypeStruct((n, ncp), jnp.float32),
        compiler_params=pltpu.CompilerParams(vmem_limit_bytes=_VMEM_LIMIT),
    )(x, w, b)


# ----------------------------- parameters -----------------------------------

# (inplanes, planes, stride) for dw2_1 ... dw6 (before widen_factor)
_DW_CFG = [
    (32, 64, 1), (64, 128, 2), (128, 128, 1), (128, 256, 2),
    (256, 256, 1), (256, 512, 2),
    (512, 512, 1), (512, 512, 1), (512, 512, 1), (512, 512, 1), (512, 512, 1),
    (512, 1024, 2), (1024, 1024, 1),
]


def _bn_params(c):
    # PyTorch init in MobileNet.__init__: weight=1, bias=0; running stats 0/1.
    return dict(gamma=jnp.ones((c,), jnp.float32),
                beta=jnp.zeros((c,), jnp.float32),
                mean=jnp.zeros((c,), jnp.float32),
                var=jnp.ones((c,), jnp.float32))


def _conv_init(key, shape):
    # m.weight.data.normal_(0, sqrt(2 / (kh * kw * out_channels)))
    n = shape[2] * shape[3] * shape[0]
    return jax.random.normal(key, shape, jnp.float32) * math.sqrt(2.0 / n)


def init_params(key, widen_factor=1.0, num_classes=1000, input_channel=3):
    wf = widen_factor
    keys = jax.random.split(key, 2 * len(_DW_CFG) + 3)
    ki = iter(keys)
    c1 = int(32 * wf)
    params = dict(
        conv1_w=_conv_init(next(ki), (c1, input_channel, 3, 3)),
        bn1=_bn_params(c1),
        blocks=[],
    )
    for (cin, cout, stride) in _DW_CFG:
        cin, cout = int(cin * wf), int(cout * wf)
        params['blocks'].append(dict(
            stride=stride,
            conv_dw_w=_conv_init(next(ki), (cin, 1, 3, 3)),
            bn_dw=_bn_params(cin),
            conv_sep_w=_conv_init(next(ki), (cout, cin, 1, 1)),
            bn_sep=_bn_params(cout),
        ))
    cfc = int(1024 * wf)
    bound = 1.0 / math.sqrt(cfc)     # PyTorch nn.Linear default init
    params['fc_w'] = jax.random.uniform(
        next(ki), (num_classes, cfc), jnp.float32, -bound, bound)
    params['fc_b'] = jax.random.uniform(
        next(ki), (num_classes,), jnp.float32, -bound, bound)
    return params


def pack_params(params):
    """Fold eval-mode BN into per-channel scale/bias (f32), zero-pad channel dims
    to lane multiples, and pre-layout / pre-cast the MXU operands to bf16."""
    packed = {}

    # conv1: (Cout, Cin, 3, 3) -> (9, Cin_pad, Cout_pad) bf16
    w1 = params['conv1_w']
    cout, cin = w1.shape[0], w1.shape[1]
    cinp = _ceil_to(cin, 8)                  # K alignment for per-tap matmuls
    coutp = _ceil_to(cout, LANE)
    w9 = jnp.transpose(w1, (2, 3, 1, 0)).reshape(9, cin, cout)
    w9 = _pad_to(_pad_to(w9, cinp, 1), coutp, 2)
    s, b = _bn_fold(params['bn1'])
    packed['conv1'] = dict(
        cin_pad=cinp,
        w=w9.astype(jnp.bfloat16),
        scale=_pad_to(s, coutp, 0).reshape(1, coutp),
        bias=_pad_to(b, coutp, 0).reshape(1, coutp),
    )

    packed['blocks'] = []
    for blk in params['blocks']:
        cin = blk['conv_dw_w'].shape[0]
        cout = blk['conv_sep_w'].shape[0]
        cinp = _ceil_to(cin, LANE)
        coutp = _ceil_to(cout, LANE)
        wdw = jnp.transpose(blk['conv_dw_w'][:, 0], (1, 2, 0)).reshape(9, cin)
        s1, b1 = _bn_fold(blk['bn_dw'])
        wsep = jnp.transpose(blk['conv_sep_w'][:, :, 0, 0], (1, 0))   # (Cin, Cout)
        s2, b2 = _bn_fold(blk['bn_sep'])
        packed['blocks'].append(dict(
            stride=blk['stride'],
            wdw=_pad_to(wdw, cinp, 1),
            s1=_pad_to(s1, cinp, 0).reshape(1, cinp),
            b1=_pad_to(b1, cinp, 0).reshape(1, cinp),
            wsep=_pad_to(_pad_to(wsep, cinp, 0), coutp, 1).astype(jnp.bfloat16),
            s2=_pad_to(s2, coutp, 0).reshape(1, coutp),
            b2=_pad_to(b2, coutp, 0).reshape(1, coutp),
        ))

    fw = params['fc_w']                         # (num_classes, C)
    nc, c = fw.shape
    cp = _ceil_to(c, LANE)
    ncp = _ceil_to(nc, LANE)
    packed['fc'] = dict(
        num_classes=nc,
        w=_pad_to(_pad_to(jnp.transpose(fw), cp, 0), ncp, 1).astype(jnp.bfloat16),
        b=_pad_to(params['fc_b'], ncp, 0).reshape(1, ncp),
    )
    return packed


# ----------------------------- forward pass ----------------------------------

def mobilenet_forward(packed, x_nchw):
    x = jnp.transpose(x_nchw, (0, 2, 3, 1)).astype(jnp.float32)   # NCHW -> NHWC

    c1 = packed['conv1']
    x = _pad_to(x, c1['cin_pad'], 3)
    x = conv1_bn_relu(x, c1['w'], c1['scale'], c1['bias'])

    for blk in packed['blocks']:
        x = dw_block(x, blk['wdw'], blk['s1'], blk['b1'],
                     blk['wsep'], blk['s2'], blk['b2'], blk['stride'])

    n, h, w, cp = x.shape
    fc = packed['fc']
    logits = pool_fc(x.reshape(n, h * w, cp), fc['w'], fc['b'])
    return logits[:, :fc['num_classes']]


# ----------------------------- main -------------------------------------------

if __name__ == "__main__":
    key = jax.random.PRNGKey(0)
    kp, kx = jax.random.split(key)

    widen_factor = 0.25          # small channel widths: 8 -> ... -> 256
    num_classes = 16
    params = init_params(kp, widen_factor=widen_factor,
                         num_classes=num_classes, input_channel=3)
    packed = pack_params(params)

    # PyTorch-style NCHW input; 32x32 spatial so the 5 stride-2 stages reach 1x1.
    x = jax.random.normal(kx, (2, 3, 32, 32), jnp.float32)

    out = mobilenet_forward(packed, x)
    out = jax.block_until_ready(out)
    assert out.shape == (2, num_classes), out.shape
    assert bool(jnp.all(jnp.isfinite(out)))
    print("KERNEL_OK")
</pallas_src>

<mosaic_0001>
module attributes {stable_mosaic.version = 11 : i64} {
  func.func @_conv1_kernel(%arg0: i32, %arg1: memref<1x4x17x17x8xf32, #tpu.memory_space<vmem>>, %arg2: memref<9x8x128xbf16, #tpu.memory_space<vmem>>, %arg3: memref<1x128xf32, #tpu.memory_space<vmem>>, %arg4: memref<1x128xf32, #tpu.memory_space<vmem>>, %arg5: memref<1x16x16x128xf32, #tpu.memory_space<vmem>>) attributes {dimension_semantics = [#tpu.dimension_semantics<parallel>], iteration_bounds = array<i64: 2>, scalar_prefetch = 0 : i64, scratch_operands = 0 : i64, tpu.core_type = #tpu.core_type<tc>, window_params = [{transform_indices = @transform_0, window_bounds = array<i64: 1, 4, 17, 17, 8>}, {pipeline_mode = #tpu.pipeline_mode<synchronous>, transform_indices = @transform_1, window_bounds = array<i64: 9, 8, 128>}, {pipeline_mode = #tpu.pipeline_mode<synchronous>, transform_indices = @transform_2, window_bounds = array<i64: 1, 128>}, {pipeline_mode = #tpu.pipeline_mode<synchronous>, transform_indices = @transform_3, window_bounds = array<i64: 1, 128>}, {transform_indices = @transform_4, window_bounds = array<i64: 1, 16, 16, 128>}]} {
    %c0 = arith.constant 0 : index
    %c0_0 = arith.constant 0 : index
    %c0_1 = arith.constant 0 : index
    %c0_2 = arith.constant 0 : index
    %c0_3 = arith.constant 0 : index
    %0 = vector.load %arg1[%c0, %c0_0, %c0_1, %c0_2, %c0_3] : memref<1x4x17x17x8xf32, #tpu.memory_space<vmem>>, vector<1x1x17x17x8xf32>
    %1 = vector.shape_cast %0 : vector<1x1x17x17x8xf32> to vector<17x17x8xf32>
    %c0_4 = arith.constant 0 : index
    %c1 = arith.constant 1 : index
    %c0_5 = arith.constant 0 : index
    %c0_6 = arith.constant 0 : index
    %c0_7 = arith.constant 0 : index
    %2 = vector.load %arg1[%c0_4, %c1, %c0_5, %c0_6, %c0_7] : memref<1x4x17x17x8xf32, #tpu.memory_space<vmem>>, vector<1x1x17x17x8xf32>
    %3 = vector.shape_cast %2 : vector<1x1x17x17x8xf32> to vector<17x17x8xf32>
    %c0_8 = arith.constant 0 : index
    %c2 = arith.constant 2 : index
    %c0_9 = arith.constant 0 : index
    %c0_10 = arith.constant 0 : index
    %c0_11 = arith.constant 0 : index
    %4 = vector.load %arg1[%c0_8, %c2, %c0_9, %c0_10, %c0_11] : memref<1x4x17x17x8xf32, #tpu.memory_space<vmem>>, vector<1x1x17x17x8xf32>
    %5 = vector.shape_cast %4 : vector<1x1x17x17x8xf32> to vector<17x17x8xf32>
    %c0_12 = arith.constant 0 : index
    %c3 = arith.constant 3 : index
    %c0_13 = arith.constant 0 : index
    %c0_14 = arith.constant 0 : index
    %c0_15 = arith.constant 0 : index
    %6 = vector.load %arg1[%c0_12, %c3, %c0_13, %c0_14, %c0_15] : memref<1x4x17x17x8xf32, #tpu.memory_space<vmem>>, vector<1x1x17x17x8xf32>
    %7 = vector.shape_cast %6 : vector<1x1x17x17x8xf32> to vector<17x17x8xf32>
    %c0_16 = arith.constant 0 : index
    %c0_17 = arith.constant 0 : index
    %8 = vector.load %arg3[%c0_16, %c0_17] : memref<1x128xf32, #tpu.memory_space<vmem>>, vector<1x128xf32>
    %c0_18 = arith.constant 0 : index
    %c0_19 = arith.constant 0 : index
    %9 = vector.load %arg4[%c0_18, %c0_19] : memref<1x128xf32, #tpu.memory_space<vmem>>, vector<1x128xf32>
    %cst = arith.constant 0.000000e+00 : f32
    %10 = vector.broadcast %cst : f32 to vector<256x128xf32>
    %11 = vector.extract_strided_slice %1 {offsets = [0, 0, 0], sizes = [16, 16, 8], strides = [1, 1, 1]} : vector<17x17x8xf32> to vector<16x16x8xf32>
    %12 = vector.shape_cast %11 : vector<16x16x8xf32> to vector<256x8xf32>
    %13 = arith.truncf %12 : vector<256x8xf32> to vector<256x8xbf16>
    %c0_20 = arith.constant 0 : index
    %c0_21 = arith.constant 0 : index
    %c0_22 = arith.constant 0 : index
    %14 = vector.load %arg2[%c0_20, %c0_21, %c0_22] : memref<9x8x128xbf16, #tpu.memory_space<vmem>>, vector<1x8x128xbf16>
    %15 = vector.shape_cast %14 : vector<1x8x128xbf16> to vector<8x128xbf16>
    %cst_23 = arith.constant dense<0.000000e+00> : vector<256x128xf32>
    %16 = tpu.matmul %13, %15, %cst_23 {dimension_numbers = #tpu.dot_dimension_numbers<[1], [0], [0], [1], [0, 0, 1, 1], [], []>} : vector<256x8xbf16>, vector<8x128xbf16>, vector<256x128xf32> -> vector<256x128xf32>
    %17 = arith.addf %10, %16 : vector<256x128xf32>
    %18 = vector.extract_strided_slice %3 {offsets = [0, 0, 0], sizes = [16, 16, 8], strides = [1, 1, 1]} : vector<17x17x8xf32> to vector<16x16x8xf32>
    %19 = vector.shape_cast %18 : vector<16x16x8xf32> to vector<256x8xf32>
    %20 = arith.truncf %19 : vector<256x8xf32> to vector<256x8xbf16>
    %c1_24 = arith.constant 1 : index
    %c0_25 = arith.constant 0 : index
    %c0_26 = arith.constant 0 : index
    %21 = vector.load %arg2[%c1_24, %c0_25, %c0_26] : memref<9x8x128xbf16, #tpu.memory_space<vmem>>, vector<1x8x128xbf16>
    %22 = vector.shape_cast %21 : vector<1x8x128xbf16> to vector<8x128xbf16>
    %cst_27 = arith.constant dense<0.000000e+00> : vector<256x128xf32>
    %23 = tpu.matmul %20, %22, %cst_27 {dimension_numbers = #tpu.dot_dimension_numbers<[1], [0], [0], [1], [0, 0, 1, 1], [], []>} : vector<256x8xbf16>, vector<8x128xbf16>, vector<256x128xf32> -> vector<256x128xf32>
    %24 = arith.addf %17, %23 : vector<256x128xf32>
    %25 = vector.extract_strided_slice %1 {offsets = [0, 1, 0], sizes = [16, 16, 8], strides = [1, 1, 1]} : vector<17x17x8xf32> to vector<16x16x8xf32>
    %26 = vector.shape_cast %25 : vector<16x16x8xf32> to vector<256x8xf32>
    %27 = arith.truncf %26 : vector<256x8xf32> to vector<256x8xbf16>
    %c2_28 = arith.constant 2 : index
    %c0_29 = arith.constant 0 : index
    %c0_30 = arith.constant 0 : index
    %28 = vector.load %arg2[%c2_28, %c0_29, %c0_30] : memref<9x8x128xbf16, #tpu.memory_space<vmem>>, vector<1x8x128xbf16>
    %29 = vector.shape_cast %28 : vector<1x8x128xbf16> to vector<8x128xbf16>
    %cst_31 = arith.constant dense<0.000000e+00> : vector<256x128xf32>
    %30 = tpu.matmul %27, %29, %cst_31 {dimension_numbers = #tpu.dot_dimension_numbers<[1], [0], [0], [1], [0, 0, 1, 1], [], []>} : vector<256x8xbf16>, vector<8x128xbf16>, vector<256x128xf32> -> vector<256x128xf32>
    %31 = arith.addf %24, %30 : vector<256x128xf32>
    %32 = vector.extract_strided_slice %5 {offsets = [0, 0, 0], sizes = [16, 16, 8], strides = [1, 1, 1]} : vector<17x17x8xf32> to vector<16x16x8xf32>
    %33 = vector.shape_cast %32 : vector<16x16x8xf32> to vector<256x8xf32>
    %34 = arith.truncf %33 : vector<256x8xf32> to vector<256x8xbf16>
    %c3_32 = arith.constant 3 : index
    %c0_33 = arith.constant 0 : index
    %c0_34 = arith.constant 0 : index
    %35 = vector.load %arg2[%c3_32, %c0_33, %c0_34] : memref<9x8x128xbf16, #tpu.memory_space<vmem>>, vector<1x8x128xbf16>
    %36 = vector.shape_cast %35 : vector<1x8x128xbf16> to vector<8x128xbf16>
    %cst_35 = arith.constant dense<0.000000e+00> : vector<256x128xf32>
    %37 = tpu.matmul %34, %36, %cst_35 {dimension_numbers = #tpu.dot_dimension_numbers<[1], [0], [0], [1], [0, 0, 1, 1], [], []>} : vector<256x8xbf16>, vector<8x128xbf16>, vector<256x128xf32> -> vector<256x128xf32>
    %38 = arith.addf %31, %37 : vector<256x128xf32>
    %39 = vector.extract_strided_slice %7 {offsets = [0, 0, 0], sizes = [16, 16, 8], strides = [1, 1, 1]} : vector<17x17x8xf32> to vector<16x16x8xf32>
    %40 = vector.shape_cast %39 : vector<16x16x8xf32> to vector<256x8xf32>
    %41 = arith.truncf %40 : vector<256x8xf32> to vector<256x8xbf16>
    %c4 = arith.constant 4 : index
    %c0_36 = arith.constant 0 : index
    %c0_37 = arith.constant 0 : index
    %42 = vector.load %arg2[%c4, %c0_36, %c0_37] : memref<9x8x128xbf16, #tpu.memory_space<vmem>>, vector<1x8x128xbf16>
    %43 = vector.shape_cast %42 : vector<1x8x128xbf16> to vector<8x128xbf16>
    %cst_38 = arith.constant dense<0.000000e+00> : vector<256x128xf32>
    %44 = tpu.matmul %41, %43, %cst_38 {dimension_numbers = #tpu.dot_dimension_numbers<[1], [0], [0], [1], [0, 0, 1, 1], [], []>} : vector<256x8xbf16>, vector<8x128xbf16>, vector<256x128xf32> -> vector<256x128xf32>
    %45 = arith.addf %38, %44 : vector<256x128xf32>
    %46 = vector.extract_strided_slice %5 {offsets = [0, 1, 0], sizes = [16, 16, 8], strides = [1, 1, 1]} : vector<17x17x8xf32> to vector<16x16x8xf32>
    %47 = vector.shape_cast %46 : vector<16x16x8xf32> to vector<256x8xf32>
    %48 = arith.truncf %47 : vector<256x8xf32> to vector<256x8xbf16>
    %c5 = arith.constant 5 : index
    %c0_39 = arith.constant 0 : index
    %c0_40 = arith.constant 0 : index
    %49 = vector.load %arg2[%c5, %c0_39, %c0_40] : memref<9x8x128xbf16, #tpu.memory_space<vmem>>, vector<1x8x128xbf16>
    %50 = vector.shape_cast %49 : vector<1x8x128xbf16> to vector<8x128xbf16>
    %cst_41 = arith.constant dense<0.000000e+00> : vector<256x128xf32>
    %51 = tpu.matmul %48, %50, %cst_41 {dimension_numbers = #tpu.dot_dimension_numbers<[1], [0], [0], [1], [0, 0, 1, 1], [], []>} : vector<256x8xbf16>, vector<8x128xbf16>, vector<256x128xf32> -> vector<256x128xf32>
    %52 = arith.addf %45, %51 : vector<256x128xf32>
    %53 = vector.extract_strided_slice %1 {offsets = [1, 0, 0], sizes = [16, 16, 8], strides = [1, 1, 1]} : vector<17x17x8xf32> to vector<16x16x8xf32>
    %54 = vector.shape_cast %53 : vector<16x16x8xf32> to vector<256x8xf32>
    %55 = arith.truncf %54 : vector<256x8xf32> to vector<256x8xbf16>
    %c6 = arith.constant 6 : index
    %c0_42 = arith.constant 0 : index
    %c0_43 = arith.constant 0 : index
    %56 = vector.load %arg2[%c6, %c0_42, %c0_43] : memref<9x8x128xbf16, #tpu.memory_space<vmem>>, vector<1x8x128xbf16>
    %57 = vector.shape_cast %56 : vector<1x8x128xbf16> to vector<8x128xbf16>
    %cst_44 = arith.constant dense<0.000000e+00> : vector<256x128xf32>
    %58 = tpu.matmul %55, %57, %cst_44 {dimension_numbers = #tpu.dot_dimension_numbers<[1], [0], [0], [1], [0, 0, 1, 1], [], []>} : vector<256x8xbf16>, vector<8x128xbf16>, vector<256x128xf32> -> vector<256x128xf32>
    %59 = arith.addf %52, %58 : vector<256x128xf32>
    %60 = vector.extract_strided_slice %3 {offsets = [1, 0, 0], sizes = [16, 16, 8], strides = [1, 1, 1]} : vector<17x17x8xf32> to vector<16x16x8xf32>
    %61 = vector.shape_cast %60 : vector<16x16x8xf32> to vector<256x8xf32>
    %62 = arith.truncf %61 : vector<256x8xf32> to vector<256x8xbf16>
    %c7 = arith.constant 7 : index
    %c0_45 = arith.constant 0 : index
    %c0_46 = arith.constant 0 : index
    %63 = vector.load %arg2[%c7, %c0_45, %c0_46] : memref<9x8x128xbf16, #tpu.memory_space<vmem>>, vector<1x8x128xbf16>
    %64 = vector.shape_cast %63 : vector<1x8x128xbf16> to vector<8x128xbf16>
    %cst_47 = arith.constant dense<0.000000e+00> : vector<256x128xf32>
    %65 = tpu.matmul %62, %64, %cst_47 {dimension_numbers = #tpu.dot_dimension_numbers<[1], [0], [0], [1], [0, 0, 1, 1], [], []>} : vector<256x8xbf16>, vector<8x128xbf16>, vector<256x128xf32> -> vector<256x128xf32>
    %66 = arith.addf %59, %65 : vector<256x128xf32>
    %67 = vector.extract_strided_slice %1 {offsets = [1, 1, 0], sizes = [16, 16, 8], strides = [1, 1, 1]} : vector<17x17x8xf32> to vector<16x16x8xf32>
    %68 = vector.shape_cast %67 : vector<16x16x8xf32> to vector<256x8xf32>
    %69 = arith.truncf %68 : vector<256x8xf32> to vector<256x8xbf16>
    %c8 = arith.constant 8 : index
    %c0_48 = arith.constant 0 : index
    %c0_49 = arith.constant 0 : index
    %70 = vector.load %arg2[%c8, %c0_48, %c0_49] : memref<9x8x128xbf16, #tpu.memory_space<vmem>>, vector<1x8x128xbf16>
    %71 = vector.shape_cast %70 : vector<1x8x128xbf16> to vector<8x128xbf16>
    %cst_50 = arith.constant dense<0.000000e+00> : vector<256x128xf32>
    %72 = tpu.matmul %69, %71, %cst_50 {dimension_numbers = #tpu.dot_dimension_numbers<[1], [0], [0], [1], [0, 0, 1, 1], [], []>} : vector<256x8xbf16>, vector<8x128xbf16>, vector<256x128xf32> -> vector<256x128xf32>
    %73 = arith.addf %66, %72 : vector<256x128xf32>
    %74 = vector.broadcast %8 : vector<1x128xf32> to vector<256x128xf32>
    %75 = arith.mulf %73, %74 : vector<256x128xf32>
    %76 = vector.broadcast %9 : vector<1x128xf32> to vector<256x128xf32>
    %77 = arith.addf %75, %76 : vector<256x128xf32>
    %cst_51 = arith.constant 0.000000e+00 : f32
    %78 = vector.broadcast %cst_51 : f32 to vector<256x128xf32>
    %79 = arith.maximumf %77, %78 : vector<256x128xf32>
    %80 = vector.shape_cast %79 : vector<256x128xf32> to vector<16x16x128xf32>
    %c0_52 = arith.constant 0 : index
    %c0_53 = arith.constant 0 : index
    %c0_54 = arith.constant 0 : index
    %c0_55 = arith.constant 0 : index
    %81 = vector.load %arg5[%c0_52, %c0_53, %c0_54, %c0_55] : memref<1x16x16x128xf32, #tpu.memory_space<vmem>>, vector<1x16x16x128xf32>
    %82 = vector.shape_cast %81 : vector<1x16x16x128xf32> to vector<16x16x128xf32>
    %83 = vector.shape_cast %80 : vector<16x16x128xf32> to vector<1x16x16x128xf32>
    tpu.vector_store %arg5[%c0_52, %c0_53, %c0_54, %c0_55], %83 {strides = array<i32>} : memref<1x16x16x128xf32, #tpu.memory_space<vmem>>, vector<1x16x16x128xf32>,
    return
  }
  func.func @transform_0(%arg0: i32) -> (i32, i32, i32, i32, i32) {
    %c0_i32 = arith.constant 0 : i32
    %c0_i32_0 = arith.constant 0 : i32
    %c0_i32_1 = arith.constant 0 : i32
    %c0_i32_2 = arith.constant 0 : i32
    %c0_i32_3 = arith.constant 0 : i32
    return %arg0, %c0_i32, %c0_i32_0, %c0_i32_1, %c0_i32_2 : i32, i32, i32, i32, i32
  }
  func.func @transform_1(%arg0: i32) -> (i32, i32, i32) {
    %c0_i32 = arith.constant 0 : i32
    %c0_i32_0 = arith.constant 0 : i32
    %c0_i32_1 = arith.constant 0 : i32
    %c0_i32_2 = arith.constant 0 : i32
    return %c0_i32, %c0_i32_0, %c0_i32_1 : i32, i32, i32
  }
  func.func @transform_2(%arg0: i32) -> (i32, i32) {
    %c0_i32 = arith.constant 0 : i32
    %c0_i32_0 = arith.constant 0 : i32
    %c0_i32_1 = arith.constant 0 : i32
    return %c0_i32, %c0_i32_0 : i32, i32
  }
  func.func @transform_3(%arg0: i32) -> (i32, i32) {
    %c0_i32 = arith.constant 0 : i32
    %c0_i32_0 = arith.constant 0 : i32
    %c0_i32_1 = arith.constant 0 : i32
    return %c0_i32, %c0_i32_0 : i32, i32
  }
  func.func @transform_4(%arg0: i32) -> (i32, i32, i32, i32) {
    %c0_i32 = arith.constant 0 : i32
    %c0_i32_0 = arith.constant 0 : i32
    %c0_i32_1 = arith.constant 0 : i32
    %c0_i32_2 = arith.constant 0 : i32
    return %arg0, %c0_i32, %c0_i32_0, %c0_i32_1 : i32, i32, i32, i32
  }
}

</mosaic_0001>

<llo_original>
// kernel: tpu_custom_call.1
$region0: #{tpu_custom_call.1}
  #allocation0 [shape = 'u32[]', space=smem, size = 0x4, offset = 0x4, fixed_abs, tag = 'smem constant byte address 0x4 - core index']
  #allocation1 [shape = 'u32[144,128]{1,0:T(1,128)}', space=vmem, size = 0x12000, scoped, tag = 'internal scratch']
  %s0 = inlined_call_operand.vmem [shape: f32[2,4,17,17,8], index: 0, kind: input, shape index: {}]
  %s1 = inlined_call_operand.vmem [shape: bf16[9,8,128], index: 1, kind: input, shape index: {}]
  %s2 = inlined_call_operand.vmem [shape: f32[1,128], index: 2, kind: input, shape index: {}]
  %s3 = inlined_call_operand.vmem [shape: f32[1,128], index: 3, kind: input, shape index: {}]
  %s4 = inlined_call_operand.hbm [shape: f32[2,16,16,128], index: 4, kind: output, shape index: {}]
  %s5 = sld [smem:[#allocation0]]
  $region49: #{tpu_custom_call.1} parent=0
    _
  %s7 = ssub.s32 1, %s5
  %s8 = scalar_select 0, %s7, %s5
  $region1: #{tpu_custom_call.1} parent=0
    #allocation2 [shape = 'u8[262144]{0}', space=vmem, size = 0x40000, scoped, tag = 'output window, operand 0']
    #allocation3 [shape = 's32[2]{0}', space=sflag, size = 0x8, scoped, tag = 'scoped memory for tpu_custom_call.1']
    %9 = vsyncpa [#allocation3], 0
    %s10 = scalar_lea.sflag [#allocation3], 1
    %11 = vsyncpa %s10, 0
    loop: start=0, step=1, limit=4
    $region2: #{tpu_custom_call.1} parent=1 // loop_pre_header
      _
    $region3: #{tpu_custom_call.1} parent=1 // loop_header
      %s13 = sphi 0, %s17
      %p14 = scmp.ge.s32.totalorder %s13, 4
      %s23 = sphi 0, %s25
      %s26 = sphi 0, %s23
      %s27 = sphi 0, %s26
      %s43 = sphi 0, %s27
      %s47 = sphi 0, %s47
      %s49 = sphi 0, %s47
      %s50 = sphi 0, %s49
      %s64 = sphi 0, %s50
      %s68 = sphi 0, %s68
      %s70 = sphi 0, %s68
      %s71 = sphi 0, %s70
      %s85 = sphi 0, %s71
      %s89 = sphi 0, %s89
      %s91 = sphi 0, %s89
      %s92 = sphi 0, %s91
      %s106 = sphi 0, %s92
      %s112 = sphi 0, %s114
      %s115 = sphi 0, %s112
      %s116 = sphi 0, %s115
      %s132 = sphi 0, %s116
    $region4: #{tpu_custom_call.1} parent=1 // loop_header_branch
      %16 = sbr.rel (%p14) target = $region8
    $region5: #{tpu_custom_call.1} parent=1 // loop_body
      %s18 = ssub.s32 %s13, 1
      %s19 = ssub.s32 %s13, 2
      %s20 = sadd.s32 %s13, 1
      %s21 = ssub.s32 %s13, %s20
      %p22 = scmp.eq.s32.totalorder %s21, 0
      %s24 = sadd.s32 %s23, 1
      %s25 = scalar_select %p22, %s23, %s24
      %p28 = pneg %p22
      %p29 = scmp.eq.s32.totalorder %s13, 1
      %p30 = por %p28, %p29
      %p31 = scmp.ne.s32.totalorder %s23, %s26
      %p32 = scmp.eq.s32.totalorder %s13, 0
      %p33 = por %p31, %p32
      %p34 = scmp.ne.s32.totalorder %s23, %s26
      %p35 = scmp.eq.s32.totalorder %s18, 1
      %p36 = por %p34, %p35
      %p37 = scmp.ne.s32.totalorder %s26, %s27
      %p38 = scmp.eq.s32.totalorder %s18, 0
      %p39 = por %p37, %p38
      %p40 = scmp.ne.s32.totalorder %s26, %s27
      %p41 = scmp.eq.s32.totalorder %s19, 1
      %p42 = por %p40, %p41
      %p44 = scmp.ne.s32.totalorder %s27, %s43
      %p45 = scmp.eq.s32.totalorder %s19, 0
      %p46 = por %p44, %p45
      %s48 = sadd.s32 %s47, 1
      %p51 = scmp.eq.s32.totalorder %s13, 1
      %p52 = scmp.ne.s32.totalorder %s47, %s49
      %p53 = scmp.eq.s32.totalorder %s13, 0
      %p54 = por %p52, %p53
      %p55 = scmp.ne.s32.totalorder %s47, %s49
      %p56 = scmp.eq.s32.totalorder %s18, 1
      %p57 = por %p55, %p56
      %p58 = scmp.ne.s32.totalorder %s49, %s50
      %p59 = scmp.eq.s32.totalorder %s18, 0
      %p60 = por %p58, %p59
      %p61 = scmp.ne.s32.totalorder %s49, %s50
      %p62 = scmp.eq.s32.totalorder %s19, 1
      %p63 = por %p61, %p62
      %p65 = scmp.ne.s32.totalorder %s50, %s64
      %p66 = scmp.eq.s32.totalorder %s19, 0
      %p67 = por %p65, %p66
      %s69 = sadd.s32 %s68, 1
      %p72 = scmp.eq.s32.totalorder %s13, 1
      %p73 = scmp.ne.s32.totalorder %s68, %s70
      %p74 = scmp.eq.s32.totalorder %s13, 0
      %p75 = por %p73, %p74
      %p76 = scmp.ne.s32.totalorder %s68, %s70
      %p77 = scmp.eq.s32.totalorder %s18, 1
      %p78 = por %p76, %p77
      %p79 = scmp.ne.s32.totalorder %s70, %s71
      %p80 = scmp.eq.s32.totalorder %s18, 0
      %p81 = por %p79, %p80
      %p82 = scmp.ne.s32.totalorder %s70, %s71
      %p83 = scmp.eq.s32.totalorder %s19, 1
      %p84 = por %p82, %p83
      %p86 = scmp.ne.s32.totalorder %s71, %s85
      %p87 = scmp.eq.s32.totalorder %s19, 0
      %p88 = por %p86, %p87
      %s90 = sadd.s32 %s89, 1
      %p93 = scmp.eq.s32.totalorder %s13, 1
      %p94 = scmp.ne.s32.totalorder %s89, %s91
      %p95 = scmp.eq.s32.totalorder %s13, 0
      %p96 = por %p94, %p95
      %p97 = scmp.ne.s32.totalorder %s89, %s91
      %p98 = scmp.eq.s32.totalorder %s18, 1
      %p99 = por %p97, %p98
      %p100 = scmp.ne.s32.totalorder %s91, %s92
      %p101 = scmp.eq.s32.totalorder %s18, 0
      %p102 = por %p100, %p101
      %p103 = scmp.ne.s32.totalorder %s91, %s92
      %p104 = scmp.eq.s32.totalorder %s19, 1
      %p105 = por %p103, %p104
      %p107 = scmp.ne.s32.totalorder %s92, %s106
      %p108 = scmp.eq.s32.totalorder %s19, 0
      %p109 = por %p107, %p108
      %s110 = ssub.s32 %s13, %s20
      %p111 = scmp.eq.s32.totalorder %s110, 0
      %s113 = sadd.s32 %s112, 1
      %s114 = scalar_select %p111, %s112, %s113
      %p117 = pneg %p111
      %p118 = scmp.eq.s32.totalorder %s13, 1
      %p119 = por %p117, %p118
      %p120 = scmp.ne.s32.totalorder %s112, %s115
      %p121 = scmp.eq.s32.totalorder %s13, 0
      %p122 = por %p120, %p121
      %p123 = scmp.ne.s32.totalorder %s112, %s115
      %p124 = scmp.eq.s32.totalorder %s18, 1
      %p125 = por %p123, %p124
      %p126 = scmp.ne.s32.totalorder %s115, %s116
      %p127 = scmp.eq.s32.totalorder %s18, 0
      %p128 = por %p126, %p127
      %p129 = scmp.ne.s32.totalorder %s115, %s116
      %p130 = scmp.eq.s32.totalorder %s19, 1
      %p131 = por %p129, %p130
      %p133 = scmp.ne.s32.totalorder %s116, %s132
      %p134 = scmp.eq.s32.totalorder %s19, 0
      %p135 = por %p133, %p134
      %p136 = scmp.le.s32.totalorder 1, %s13
      %p137 = scmp.lt.s32.totalorder %s13, 3
      %p138 = pnand %p136, %p137
      %p139 = pneg %p138
      // Predicated region
      $region9: #{tpu_custom_call.1} parent=5 // pred_check
        _
      $region10: #{tpu_custom_call.1} parent=5 // pred_check_branch
        %141 = sbr.rel (%p138) target = $region12
      $region11: #{tpu_custom_call.1} parent=5 // pred_region
        %s142 = ssub.s32 %s13, 1
        // Predicated region
        $region13: #{tpu_custom_call.1} parent=11 // pred_check
          %p143 = pneg %p60
        $region14: #{tpu_custom_call.1} parent=11 // pred_check_branch
          %145 = sbr.rel (%p143) target = $region16
        $region15: #{tpu_custom_call.1} parent=11 // pred_region
          _
        $region16: #{tpu_custom_call.1} parent=11 // pred_fallthru
          _
        // Predicated region
        $region17: #{tpu_custom_call.1} parent=11 // pred_check
          %p146 = pneg %p81
        $region18: #{tpu_custom_call.1} parent=11 // pred_check_branch
          %148 = sbr.rel (%p146) target = $region20
        $region19: #{tpu_custom_call.1} parent=11 // pred_region
          _
        $region20: #{tpu_custom_call.1} parent=11 // pred_fallthru
          _
        // Predicated region
        $region21: #{tpu_custom_call.1} parent=11 // pred_check
          %p149 = pneg %p102
        $region22: #{tpu_custom_call.1} parent=11 // pred_check_branch
          %151 = sbr.rel (%p149) target = $region24
        $region23: #{tpu_custom_call.1} parent=11 // pred_region
          _
        $region24: #{tpu_custom_call.1} parent=11 // pred_fallthru
          _
      $region12: #{tpu_custom_call.1} parent=5 // pred_fallthru
        _
      %p152 = scmp.lt.s32.totalorder %s13, 2
      // Predicated region
      $region25: #{tpu_custom_call.1} parent=5 // pred_check
        %p153 = pneg %p152
      $region26: #{tpu_custom_call.1} parent=5 // pred_check_branch
        %155 = sbr.rel (%p153) target = $region28
      $region27: #{tpu_custom_call.1} parent=5 // pred_region
        // Predicated region
        $region29: #{tpu_custom_call.1} parent=27 // pred_check
          %p156 = pneg %p33
        $region30: #{tpu_custom_call.1} parent=27 // pred_check_branch
          %158 = sbr.rel (%p156) target = $region32
        $region31: #{tpu_custom_call.1} parent=27 // pred_region
          %p159 = scmp.lt.s32.totalorder %s13, 1
          %s160 = scalar_select %p159, %s13, 1
          %s161 = smul.addr %s160, 204
          %s162 = smul.addr %s161, 8
          %s163 = scalar_lea.vmem %s0, %s162
        $region32: #{tpu_custom_call.1} parent=27 // pred_fallthru
          _
      $region28: #{tpu_custom_call.1} parent=5 // pred_fallthru
        _
      %p164 = scmp.le.s32.totalorder 1, %s13
      %p165 = scmp.lt.s32.totalorder %s13, 3
      %p166 = pnand %p164, %p165
      %p167 = pneg %p166
      // Predicated region
      $region33: #{tpu_custom_call.1} parent=5 // pred_check
        _
      $region34: #{tpu_custom_call.1} parent=5 // pred_check_branch
        %169 = sbr.rel (%p166) target = $region36
      $region35: #{tpu_custom_call.1} parent=5 // pred_region
        %s170 = ssub.s32 %s13, 1
        %p171 = scmp.lt.s32.totalorder %s18, 1
        %s172 = scalar_select %p171, %s18, 1
        %s173 = smul.addr %s172, 204
        %s174 = smul.addr %s173, 8
        %s175 = scalar_lea.vmem %s0, %s174
        %p176 = pneg %p39
        %p177 = pneg %p36
        %p178 = pneg %p60
        %p179 = pneg %p57
        %p180 = pneg %p81
        %p181 = pneg %p78
        %p182 = pneg %p102
        %p183 = pneg %p99
        %p184 = pneg %p128
        %p185 = pneg %p125
        %s186 = sand.u32 %s115, 1
        %s187 = scalar_lea.sflag [#allocation3], %s186
        %s188 = sand.u32 %s115, 1
        %s189 = smul.addr %s188, 256
        %s190 = scalar_lea.vmem [#allocation2], %s189
        %p191 = scmp.lt.s32.totalorder %s18, 1
        %s192 = scalar_select %p191, %s18, 1
        %s193 = smul.addr %s192, 204
        %s194 = smul.addr %s193, 8
        %s195 = scalar_lea.vmem %s0, %s194
        %v197 = vld [vmem:[%s195] sm:$0xff]
        %v198 = vld [vmem:[%s195 + $0x8] sm:$0xff]
        %v199 = vld [vmem:[%s195 + $0x10] sm:$0x1]
        %v200 = vld [vmem:[%s195 + $0x18] sm:$0xff]
        %v201 = vld [vmem:[%s195 + $0x20] sm:$0xff]
        %v202 = vld [vmem:[%s195 + $0x28] sm:$0x1]
        %v203 = vld [vmem:[%s195 + $0x30] sm:$0xff]
        %v204 = vld [vmem:[%s195 + $0x38] sm:$0xff]
        %v205 = vld [vmem:[%s195 + $0x40] sm:$0x1]
        %v206 = vld [vmem:[%s195 + $0x48] sm:$0xff]
        %v207 = vld [vmem:[%s195 + $0x50] sm:$0xff]
        %v208 = vld [vmem:[%s195 + $0x58] sm:$0x1]
        %v209 = vld [vmem:[%s195 + $0x60] sm:$0xff]
        %v210 = vld [vmem:[%s195 + $0x68] sm:$0xff]
        %v211 = vld [vmem:[%s195 + $0x70] sm:$0x1]
        %v212 = vld [vmem:[%s195 + $0x78] sm:$0xff]
        %v213 = vld [vmem:[%s195 + $0x80] sm:$0xff]
        %v214 = vld [vmem:[%s195 + $0x88] sm:$0x1]
        %v215 = vld [vmem:[%s195 + $0x90] sm:$0xff]
        %v216 = vld [vmem:[%s195 + $0x98] sm:$0xff]
        %v217 = vld [vmem:[%s195 + $0xa0] sm:$0x1]
        %v218 = vld [vmem:[%s195 + $0xa8] sm:$0xff]
        %v219 = vld [vmem:[%s195 + $0xb0] sm:$0xff]
        %v220 = vld [vmem:[%s195 + $0xb8] sm:$0x1]
        %v221 = vld [vmem:[%s195 + $0xc0] sm:$0xff]
        %v222 = vld [vmem:[%s195 + $0xc8] sm:$0xff]
        %v223 = vld [vmem:[%s195 + $0xd0] sm:$0x1]
        %v224 = vld [vmem:[%s195 + $0xd8] sm:$0xff]
        %v225 = vld [vmem:[%s195 + $0xe0] sm:$0xff]
        %v226 = vld [vmem:[%s195 + $0xe8] sm:$0x1]
        %v227 = vld [vmem:[%s195 + $0xf0] sm:$0xff]
        %v228 = vld [vmem:[%s195 + $0xf8] sm:$0xff]
        %v229 = vld [vmem:[%s195 + $0x100] sm:$0x1]
        %v230 = vld [vmem:[%s195 + $0x108] sm:$0xff]
        %v231 = vld [vmem:[%s195 + $0x110] sm:$0xff]
        %v232 = vld [vmem:[%s195 + $0x118] sm:$0x1]
        %v233 = vld [vmem:[%s195 + $0x120] sm:$0xff]
        %v234 = vld [vmem:[%s195 + $0x128] sm:$0xff]
        %v235 = vld [vmem:[%s195 + $0x130] sm:$0x1]
        %v236 = vld [vmem:[%s195 + $0x138] sm:$0xff]
        %v237 = vld [vmem:[%s195 + $0x140] sm:$0xff]
        %v238 = vld [vmem:[%s195 + $0x148] sm:$0x1]
        %v239 = vld [vmem:[%s195 + $0x150] sm:$0xff]
        %v240 = vld [vmem:[%s195 + $0x158] sm:$0xff]
        %v241 = vld [vmem:[%s195 + $0x160] sm:$0x1]
        %v242 = vld [vmem:[%s195 + $0x168] sm:$0xff]
        %v243 = vld [vmem:[%s195 + $0x170] sm:$0xff]
        %v244 = vld [vmem:[%s195 + $0x178] sm:$0x1]
        %v245 = vld [vmem:[%s195 + $0x180] sm:$0xff]
        %v246 = vld [vmem:[%s195 + $0x188] sm:$0xff]
        %v247 = vld [vmem:[%s195 + $0x190] sm:$0x1]
        %s248 = scalar_lea.vmem %s195, 408
        %v249 = vld [vmem:[%s248] sm:$0xff]
        %v250 = vld [vmem:[%s248 + $0x8] sm:$0xff]
        %v251 = vld [vmem:[%s248 + $0x18] sm:$0xff]
        %v252 = vld [vmem:[%s248 + $0x20] sm:$0xff]
        %v253 = vld [vmem:[%s248 + $0x30] sm:$0xff]
        %v254 = vld [vmem:[%s248 + $0x38] sm:$0xff]
        %v255 = vld [vmem:[%s248 + $0x48] sm:$0xff]
        %v256 = vld [vmem:[%s248 + $0x50] sm:$0xff]
        %v257 = vld [vmem:[%s248 + $0x60] sm:$0xff]
        %v258 = vld [vmem:[%s248 + $0x68] sm:$0xff]
        %v259 = vld [vmem:[%s248 + $0x78] sm:$0xff]
        %v260 = vld [vmem:[%s248 + $0x80] sm:$0xff]
        %v261 = vld [vmem:[%s248 + $0x90] sm:$0xff]
        %v262 = vld [vmem:[%s248 + $0x98] sm:$0xff]
        %v263 = vld [vmem:[%s248 + $0xa8] sm:$0xff]
        %v264 = vld [vmem:[%s248 + $0xb0] sm:$0xff]
        %v265 = vld [vmem:[%s248 + $0xc0] sm:$0xff]
        %v266 = vld [vmem:[%s248 + $0xc8] sm:$0xff]
        %v267 = vld [vmem:[%s248 + $0xd8] sm:$0xff]
        %v268 = vld [vmem:[%s248 + $0xe0] sm:$0xff]
        %v269 = vld [vmem:[%s248 + $0xf0] sm:$0xff]
        %v270 = vld [vmem:[%s248 + $0xf8] sm:$0xff]
        %v271 = vld [vmem:[%s248 + $0x108] sm:$0xff]
        %v272 = vld [vmem:[%s248 + $0x110] sm:$0xff]
        %v273 = vld [vmem:[%s248 + $0x120] sm:$0xff]
        %v274 = vld [vmem:[%s248 + $0x128] sm:$0xff]
        %v275 = vld [vmem:[%s248 + $0x138] sm:$0xff]
        %v276 = vld [vmem:[%s248 + $0x140] sm:$0xff]
        %v277 = vld [vmem:[%s248 + $0x150] sm:$0xff]
        %v278 = vld [vmem:[%s248 + $0x158] sm:$0xff]
        %v279 = vld [vmem:[%s248 + $0x168] sm:$0xff]
        %v280 = vld [vmem:[%s248 + $0x170] sm:$0xff]
        %v281 = vld [vmem:[%s248 + $0x180] sm:$0xff]
        %v282 = vld [vmem:[%s248 + $0x188] sm:$0xff]
        %s283 = scalar_lea.vmem %s195, 816
        %v284 = vld [vmem:[%s283] sm:$0xff]
        %v285 = vld [vmem:[%s283 + $0x8] sm:$0xff]
        %v286 = vld [vmem:[%s283 + $0x10] sm:$0x1]
        %v287 = vld [vmem:[%s283 + $0x18] sm:$0xff]
        %v288 = vld [vmem:[%s283 + $0x20] sm:$0xff]
        %v289 = vld [vmem:[%s283 + $0x28] sm:$0x1]
        %v290 = vld [vmem:[%s283 + $0x30] sm:$0xff]
        %v291 = vld [vmem:[%s283 + $0x38] sm:$0xff]
        %v292 = vld [vmem:[%s283 + $0x40] sm:$0x1]
        %v293 = vld [vmem:[%s283 + $0x48] sm:$0xff]
        %v294 = vld [vmem:[%s283 + $0x50] sm:$0xff]
        %v295 = vld [vmem:[%s283 + $0x58] sm:$0x1]
        %v296 = vld [vmem:[%s283 + $0x60] sm:$0xff]
        %v297 = vld [vmem:[%s283 + $0x68] sm:$0xff]
        %v298 = vld [vmem:[%s283 + $0x70] sm:$0x1]
        %v299 = vld [vmem:[%s283 + $0x78] sm:$0xff]
        %v300 = vld [vmem:[%s283 + $0x80] sm:$0xff]
        %v301 = vld [vmem:[%s283 + $0x88] sm:$0x1]
        %v302 = vld [vmem:[%s283 + $0x90] sm:$0xff]
        %v303 = vld [vmem:[%s283 + $0x98] sm:$0xff]
        %v304 = vld [vmem:[%s283 + $0xa0] sm:$0x1]
        %v305 = vld [vmem:[%s283 + $0xa8] sm:$0xff]
        %v306 = vld [vmem:[%s283 + $0xb0] sm:$0xff]
        %v307 = vld [vmem:[%s283 + $0xb8] sm:$0x1]
        %v308 = vld [vmem:[%s283 + $0xc0] sm:$0xff]
        %v309 = vld [vmem:[%s283 + $0xc8] sm:$0xff]
        %v310 = vld [vmem:[%s283 + $0xd0] sm:$0x1]
        %v311 = vld [vmem:[%s283 + $0xd8] sm:$0xff]
        %v312 = vld [vmem:[%s283 + $0xe0] sm:$0xff]
        %v313 = vld [vmem:[%s283 + $0xe8] sm:$0x1]
        %v314 = vld [vmem:[%s283 + $0xf0] sm:$0xff]
        %v315 = vld [vmem:[%s283 + $0xf8] sm:$0xff]
        %v316 = vld [vmem:[%s283 + $0x100] sm:$0x1]
        %v317 = vld [vmem:[%s283 + $0x108] sm:$0xff]
        %v318 = vld [vmem:[%s283 + $0x110] sm:$0xff]
        %v319 = vld [vmem:[%s283 + $0x118] sm:$0x1]
        %v320 = vld [vmem:[%s283 + $0x120] sm:$0xff]
        %v321 = vld [vmem:[%s283 + $0x128] sm:$0xff]
        %v322 = vld [vmem:[%s283 + $0x130] sm:$0x1]
        %v323 = vld [vmem:[%s283 + $0x138] sm:$0xff]
        %v324 = vld [vmem:[%s283 + $0x140] sm:$0xff]
        %v325 = vld [vmem:[%s283 + $0x148] sm:$0x1]
        %v326 = vld [vmem:[%s283 + $0x150] sm:$0xff]
        %v327 = vld [vmem:[%s283 + $0x158] sm:$0xff]
        %v328 = vld [vmem:[%s283 + $0x160] sm:$0x1]
        %v329 = vld [vmem:[%s283 + $0x168] sm:$0xff]
        %v330 = vld [vmem:[%s283 + $0x170] sm:$0xff]
        %v331 = vld [vmem:[%s283 + $0x178] sm:$0x1]
        %s332 = scalar_lea.vmem %s195, 1224
        %v333 = vld [vmem:[%s332] sm:$0xff]
        %v334 = vld [vmem:[%s332 + $0x8] sm:$0xff]
        %v335 = vld [vmem:[%s332 + $0x18] sm:$0xff]
        %v336 = vld [vmem:[%s332 + $0x20] sm:$0xff]
        %v337 = vld [vmem:[%s332 + $0x30] sm:$0xff]
        %v338 = vld [vmem:[%s332 + $0x38] sm:$0xff]
        %v339 = vld [vmem:[%s332 + $0x48] sm:$0xff]
        %v340 = vld [vmem:[%s332 + $0x50] sm:$0xff]
        %v341 = vld [vmem:[%s332 + $0x60] sm:$0xff]
        %v342 = vld [vmem:[%s332 + $0x68] sm:$0xff]
        %v343 = vld [vmem:[%s332 + $0x78] sm:$0xff]
        %v344 = vld [vmem:[%s332 + $0x80] sm:$0xff]
        %v345 = vld [vmem:[%s332 + $0x90] sm:$0xff]
        %v346 = vld [vmem:[%s332 + $0x98] sm:$0xff]
        %v347 = vld [vmem:[%s332 + $0xa8] sm:$0xff]
        %v348 = vld [vmem:[%s332 + $0xb0] sm:$0xff]
        %v349 = vld [vmem:[%s332 + $0xc0] sm:$0xff]
        %v350 = vld [vmem:[%s332 + $0xc8] sm:$0xff]
        %v351 = vld [vmem:[%s332 + $0xd8] sm:$0xff]
        %v352 = vld [vmem:[%s332 + $0xe0] sm:$0xff]
        %v353 = vld [vmem:[%s332 + $0xf0] sm:$0xff]
        %v354 = vld [vmem:[%s332 + $0xf8] sm:$0xff]
        %v355 = vld [vmem:[%s332 + $0x108] sm:$0xff]
        %v356 = vld [vmem:[%s332 + $0x110] sm:$0xff]
        %v357 = vld [vmem:[%s332 + $0x120] sm:$0xff]
        %v358 = vld [vmem:[%s332 + $0x128] sm:$0xff]
        %v359 = vld [vmem:[%s332 + $0x138] sm:$0xff]
        %v360 = vld [vmem:[%s332 + $0x140] sm:$0xff]
        %v361 = vld [vmem:[%s332 + $0x150] sm:$0xff]
        %v362 = vld [vmem:[%s332 + $0x158] sm:$0xff]
        %v363 = vld [vmem:[%s332 + $0x168] sm:$0xff]
        %v364 = vld [vmem:[%s332 + $0x170] sm:$0xff]
        %v365 = vld [vmem:[%s2] sm:$0x1]
        %v366 = vld [vmem:[%s3] sm:$0x1]
        %v367 = vpack.c.bf16 %v198, %v197
        %v368 = vpack.c.bf16 %v201, %v200
        %v369 = vpack.c.bf16 %v204, %v203
        %v370 = vpack.c.bf16 %v207, %v206
        %v371 = vpack.c.bf16 %v210, %v209
        %v372 = vpack.c.bf16 %v213, %v212
        %v373 = vpack.c.bf16 %v216, %v215
        %v374 = vpack.c.bf16 %v219, %v218
        %v375 = vpack.c.bf16 %v222, %v221
        %v376 = vpack.c.bf16 %v225, %v224
        %v377 = vpack.c.bf16 %v228, %v227
        %v378 = vpack.c.bf16 %v231, %v230
        %v379 = vpack.c.bf16 %v234, %v233
        %v380 = vpack.c.bf16 %v237, %v236
        %v381 = vpack.c.bf16 %v240, %v239
        %v382 = vpack.c.bf16 %v243, %v242
        %v383 = vld [vmem:[%s1] sm:$0xf]
        %v384 = vpack.c.bf16 %v250, %v249
        %v385 = vpack.c.bf16 %v252, %v251
        %v386 = vpack.c.bf16 %v254, %v253
        %v387 = vpack.c.bf16 %v256, %v255
        %v388 = vpack.c.bf16 %v258, %v257
        %v389 = vpack.c.bf16 %v260, %v259
        %v390 = vpack.c.bf16 %v262, %v261
        %v391 = vpack.c.bf16 %v264, %v263
        %v392 = vpack.c.bf16 %v266, %v265
        %v393 = vpack.c.bf16 %v268, %v267
        %v394 = vpack.c.bf16 %v270, %v269
        %v395 = vpack.c.bf16 %v272, %v271
        %v396 = vpack.c.bf16 %v274, %v273
        %v397 = vpack.c.bf16 %v276, %v275
        %v398 = vpack.c.bf16 %v278, %v277
        %v399 = vpack.c.bf16 %v280, %v279
        %s400 = scalar_lea.vmem %s1, 4
        %v401 = vld [vmem:[%s400] sm:$0xf]
        %vm402 = vcmask 64512
        %v404 = vsel %vm402, %v384, 0
        %v407 = vsel %vm402, %v385, 0
        %v410 = vsel %vm402, %v386, 0
        %v413 = vsel %vm402, %v387, 0
        %v416 = vsel %vm402, %v388, 0
        %v419 = vsel %vm402, %v389, 0
        %v422 = vsel %vm402, %v390, 0
        %v425 = vsel %vm402, %v391, 0
        %v428 = vsel %vm402, %v392, 0
        %v431 = vsel %vm402, %v393, 0
        %v434 = vsel %vm402, %v394, 0
        %v437 = vsel %vm402, %v395, 0
        %v440 = vsel %vm402, %v396, 0
        %v443 = vsel %vm402, %v397, 0
        %v446 = vsel %vm402, %v398, 0
        %v449 = vsel %vm402, %v399, 0
        %vm451 = vcmask 1043456
        %v453 = vsel %vm451, %v401, 0
        %455 = vmatprep.subr.bf16.mxu0 0
        %456 = vmatpush1.bf16.msra.mxu0 0
        %457 = vmatprep.subr.bf16.mxu0 0
        %458 = vmatpush1.bf16.msra.mxu0 0
        %459 = vmatprep.subr.bf16.mxu0 0
        %460 = vmatpush1.bf16.msra.mxu0 0
        %461 = vmatprep.subr.bf16.mxu0 0
        %462 = vmatpush1.bf16.msra.mxu0 0
        %463 = vmatprep.subr.bf16.mxu0 0
        %464 = vmatpush1.bf16.msra.mxu0 0
        %465 = vmatprep.subr.bf16.mxu0 0
        %466 = vmatpush1.bf16.msra.mxu0 0
        %467 = vmatprep.subr.bf16.mxu0 0
        %468 = vmatpush1.bf16.msra.mxu0 0
        %469 = vmatprep.subr.bf16.mxu0 0
        %470 = vmatpush1.bf16.msra.mxu0 %v453
        %471 = vmatprep.subr.bf16.mxu0 0
        %472 = vmatpush2.bf16.msra.mxu0 0
        %473 = vmatprep.subr.bf16.mxu0 0
        %474 = vmatpush2.bf16.msra.mxu0 0
        %475 = vmatprep.subr.bf16.mxu0 0
        %476 = vmatpush2.bf16.msra.mxu0 0
        %477 = vmatprep.subr.bf16.mxu0 0
        %478 = vmatpush2.bf16.msra.mxu0 0
        %479 = vmatprep.subr.bf16.mxu0 0
        %480 = vmatpush2.bf16.msra.mxu0 0
        %481 = vmatprep.subr.bf16.mxu0 0
        %482 = vmatpush2.bf16.msra.mxu0 0
        %483 = vmatprep.subr.bf16.mxu0 0
        %484 = vmatpush2.bf16.msra.mxu0 0
        %485 = vmatprep.subr.bf16.mxu0 0
        %486 = vmatpush2.bf16.msra.mxu0 0
        %487 = vmatprep.mubr.bf16.mxu0 0
        %488 = vmatmul.mubr.bf16.gmra.mxu0 %v404
        %v489 = vpop.f32.mrf.mxu0
        %v490 = vadd.f32 0.0, %v489
        %v491 = vpop.f32.mrf.mxu0
        %v492 = vpop.f32.mrf.mxu0
        %v493 = vadd.f32 0.0, %v492
        %v494 = vpop.f32.mrf.mxu0
        %495 = vmatprep.mubr.bf16.mxu0 0
        %496 = vmatmul.mubr.bf16.gmra.mxu0 %v407
        %v497 = vpop.f32.mrf.mxu0
        %v498 = vadd.f32 0.0, %v497
        %v499 = vpop.f32.mrf.mxu0
        %v500 = vpop.f32.mrf.mxu0
        %v501 = vadd.f32 0.0, %v500
        %v502 = vpop.f32.mrf.mxu0
        %503 = vmatprep.mubr.bf16.mxu0 0
        %504 = vmatmul.mubr.bf16.gmra.mxu0 %v410
        %v505 = vpop.f32.mrf.mxu0
        %v506 = vadd.f32 0.0, %v505
        %v507 = vpop.f32.mrf.mxu0
        %v508 = vpop.f32.mrf.mxu0
        %v509 = vadd.f32 0.0, %v508
        %v510 = vpop.f32.mrf.mxu0
        %511 = vmatprep.mubr.bf16.mxu0 0
        %512 = vmatmul.mubr.bf16.gmra.mxu0 %v413
        %v513 = vpop.f32.mrf.mxu0
        %v514 = vadd.f32 0.0, %v513
        %v515 = vpop.f32.mrf.mxu0
        %v516 = vpop.f32.mrf.mxu0
        %v517 = vadd.f32 0.0, %v516
        %v518 = vpop.f32.mrf.mxu0
        %519 = vmatprep.mubr.bf16.mxu0 0
        %520 = vmatmul.mubr.bf16.gmra.mxu0 %v416
        %v521 = vpop.f32.mrf.mxu0
        %v522 = vadd.f32 0.0, %v521
        %v523 = vpop.f32.mrf.mxu0
        %v524 = vpop.f32.mrf.mxu0
        %v525 = vadd.f32 0.0, %v524
        %v526 = vpop.f32.mrf.mxu0
        %527 = vmatprep.mubr.bf16.mxu0 0
        %528 = vmatmul.mubr.bf16.gmra.mxu0 %v419
        %v529 = vpop.f32.mrf.mxu0
        %v530 = vadd.f32 0.0, %v529
        %v531 = vpop.f32.mrf.mxu0
        %v532 = vpop.f32.mrf.mxu0
        %v533 = vadd.f32 0.0, %v532
        %v534 = vpop.f32.mrf.mxu0
        %535 = vmatprep.mubr.bf16.mxu0 0
        %536 = vmatmul.mubr.bf16.gmra.mxu0 %v422
        %v537 = vpop.f32.mrf.mxu0
        %v538 = vadd.f32 0.0, %v537
        %v539 = vpop.f32.mrf.mxu0
        %v540 = vpop.f32.mrf.mxu0
        %v541 = vadd.f32 0.0, %v540
        %v542 = vpop.f32.mrf.mxu0
        %543 = vmatprep.mubr.bf16.mxu0 0
        %544 = vmatmul.mubr.bf16.gmra.mxu0 %v425
        %v545 = vpop.f32.mrf.mxu0
        %v546 = vadd.f32 0.0, %v545
        %v547 = vpop.f32.mrf.mxu0
        %v548 = vpop.f32.mrf.mxu0
        %v549 = vadd.f32 0.0, %v548
        %v550 = vpop.f32.mrf.mxu0
        %551 = vmatprep.mubr.bf16.mxu0 0
        %552 = vmatmul.mubr.bf16.gmra.mxu0 %v428
        %v553 = vpop.f32.mrf.mxu0
        %v554 = vadd.f32 0.0, %v553
        %v555 = vpop.f32.mrf.mxu0
        %v556 = vpop.f32.mrf.mxu0
        %v557 = vadd.f32 0.0, %v556
        %v558 = vpop.f32.mrf.mxu0
        %559 = vmatprep.mubr.bf16.mxu0 0
        %560 = vmatmul.mubr.bf16.gmra.mxu0 %v431
        %v561 = vpop.f32.mrf.mxu0
        %v562 = vadd.f32 0.0, %v561
        %v563 = vpop.f32.mrf.mxu0
        %v564 = vpop.f32.mrf.mxu0
        %v565 = vadd.f32 0.0, %v564
        %v566 = vpop.f32.mrf.mxu0
        %567 = vmatprep.mubr.bf16.mxu0 0
        %568 = vmatmul.mubr.bf16.gmra.mxu0 %v434
        %v569 = vpop.f32.mrf.mxu0
        %v570 = vadd.f32 0.0, %v569
        %v571 = vpop.f32.mrf.mxu0
        %v572 = vpop.f32.mrf.mxu0
        %v573 = vadd.f32 0.0, %v572
        %v574 = vpop.f32.mrf.mxu0
        %575 = vmatprep.mubr.bf16.mxu0 0
        %576 = vmatmul.mubr.bf16.gmra.mxu0 %v437
        %v577 = vpop.f32.mrf.mxu0
        %v578 = vadd.f32 0.0, %v577
        %v579 = vpop.f32.mrf.mxu0
        %v580 = vpop.f32.mrf.mxu0
        %v581 = vadd.f32 0.0, %v580
        %v582 = vpop.f32.mrf.mxu0
        %583 = vmatprep.mubr.bf16.mxu0 0
        %584 = vmatmul.mubr.bf16.gmra.mxu0 %v440
        %v585 = vpop.f32.mrf.mxu0
        %v586 = vadd.f32 0.0, %v585
        %v587 = vpop.f32.mrf.mxu0
        %v588 = vpop.f32.mrf.mxu0
        %v589 = vadd.f32 0.0, %v588
        %v590 = vpop.f32.mrf.mxu0
        %591 = vmatprep.mubr.bf16.mxu0 0
        %592 = vmatmul.mubr.bf16.gmra.mxu0 %v443
        %v593 = vpop.f32.mrf.mxu0
        %v594 = vadd.f32 0.0, %v593
        %v595 = vpop.f32.mrf.mxu0
        %v596 = vpop.f32.mrf.mxu0
        %v597 = vadd.f32 0.0, %v596
        %v598 = vpop.f32.mrf.mxu0
        %599 = vmatprep.mubr.bf16.mxu0 0
        %600 = vmatmul.mubr.bf16.gmra.mxu0 %v446
        %v601 = vpop.f32.mrf.mxu0
        %v602 = vadd.f32 0.0, %v601
        %v603 = vpop.f32.mrf.mxu0
        %v604 = vpop.f32.mrf.mxu0
        %v605 = vadd.f32 0.0, %v604
        %v606 = vpop.f32.mrf.mxu0
        %607 = vmatprep.mubr.bf16.mxu0 0
        %608 = vmatmul.mubr.bf16.gmra.mxu0 %v449
        %v609 = vpop.f32.mrf.mxu0
        %v610 = vadd.f32 0.0, %v609
        %v611 = vpop.f32.mrf.mxu0
        %v612 = vpop.f32.mrf.mxu0
        %v613 = vadd.f32 0.0, %v612
        %v614 = vpop.f32.mrf.mxu0
        %615 = vdwg.mxu0
        %v617 = vsel %vm402, %v367, 0
        %v620 = vsel %vm402, %v368, 0
        %v623 = vsel %vm402, %v369, 0
        %v626 = vsel %vm402, %v370, 0
        %v629 = vsel %vm402, %v371, 0
        %v632 = vsel %vm402, %v372, 0
        %v635 = vsel %vm402, %v373, 0
        %v638 = vsel %vm402, %v374, 0
        %v641 = vsel %vm402, %v375, 0
        %v644 = vsel %vm402, %v376, 0
        %v647 = vsel %vm402, %v377, 0
        %v650 = vsel %vm402, %v378, 0
        %v653 = vsel %vm402, %v379, 0
        %v656 = vsel %vm402, %v380, 0
        %v659 = vsel %vm402, %v381, 0
        %v662 = vsel %vm402, %v382, 0
        %v665 = vsel %vm451, %v383, 0
        %667 = vmatprep.subr.bf16.mxu0 0
        %668 = vmatpush1.bf16.msra.mxu0 0
        %669 = vmatprep.subr.bf16.mxu0 0
        %670 = vmatpush1.bf16.msra.mxu0 0
        %671 = vmatprep.subr.bf16.mxu0 0
        %672 = vmatpush1.bf16.msra.mxu0 0
        %673 = vmatprep.subr.bf16.mxu0 0
        %674 = vmatpush1.bf16.msra.mxu0 0
        %675 = vmatprep.subr.bf16.mxu0 0
        %676 = vmatpush1.bf16.msra.mxu0 0
        %677 = vmatprep.subr.bf16.mxu0 0
        %678 = vmatpush1.bf16.msra.mxu0 0
        %679 = vmatprep.subr.bf16.mxu0 0
        %680 = vmatpush1.bf16.msra.mxu0 0
        %681 = vmatprep.subr.bf16.mxu0 0
        %682 = vmatpush1.bf16.msra.mxu0 %v665
        %683 = vmatprep.subr.bf16.mxu0 0
        %684 = vmatpush2.bf16.msra.mxu0 0
        %685 = vmatprep.subr.bf16.mxu0 0
        %686 = vmatpush2.bf16.msra.mxu0 0
        %687 = vmatprep.subr.bf16.mxu0 0
        %688 = vmatpush2.bf16.msra.mxu0 0
        %689 = vmatprep.subr.bf16.mxu0 0
        %690 = vmatpush2.bf16.msra.mxu0 0
        %691 = vmatprep.subr.bf16.mxu0 0
        %692 = vmatpush2.bf16.msra.mxu0 0
        %693 = vmatprep.subr.bf16.mxu0 0
        %694 = vmatpush2.bf16.msra.mxu0 0
        %695 = vmatprep.subr.bf16.mxu0 0
        %696 = vmatpush2.bf16.msra.mxu0 0
        %697 = vmatprep.subr.bf16.mxu0 0
        %698 = vmatpush2.bf16.msra.mxu0 0
        %699 = vmatprep.mubr.bf16.mxu0 0
        %700 = vmatmul.mubr.bf16.gmra.mxu0 %v617
        %v701 = vpop.f32.mrf.mxu0
        %v702 = vadd.f32 %v490, %v701
        %v703 = vpop.f32.mrf.mxu0
        %v704 = vpop.f32.mrf.mxu0
        %v705 = vadd.f32 %v493, %v704
        %v706 = vpop.f32.mrf.mxu0
        %707 = vmatprep.mubr.bf16.mxu0 0
        %708 = vmatmul.mubr.bf16.gmra.mxu0 %v620
        %v709 = vpop.f32.mrf.mxu0
        %v710 = vadd.f32 %v498, %v709
        %v711 = vpop.f32.mrf.mxu0
        %v712 = vpop.f32.mrf.mxu0
        %v713 = vadd.f32 %v501, %v712
        %v714 = vpop.f32.mrf.mxu0
        %715 = vmatprep.mubr.bf16.mxu0 0
        %716 = vmatmul.mubr.bf16.gmra.mxu0 %v623
        %v717 = vpop.f32.mrf.mxu0
        %v718 = vadd.f32 %v506, %v717
        %v719 = vpop.f32.mrf.mxu0
        %v720 = vpop.f32.mrf.mxu0
        %v721 = vadd.f32 %v509, %v720
        %v722 = vpop.f32.mrf.mxu0
        %723 = vmatprep.mubr.bf16.mxu0 0
        %724 = vmatmul.mubr.bf16.gmra.mxu0 %v626
        %v725 = vpop.f32.mrf.mxu0
        %v726 = vadd.f32 %v514, %v725
        %v727 = vpop.f32.mrf.mxu0
        %v728 = vpop.f32.mrf.mxu0
        %v729 = vadd.f32 %v517, %v728
        %v730 = vpop.f32.mrf.mxu0
        %731 = vmatprep.mubr.bf16.mxu0 0
        %732 = vmatmul.mubr.bf16.gmra.mxu0 %v629
        %v733 = vpop.f32.mrf.mxu0
        %v734 = vadd.f32 %v522, %v733
        %v735 = vpop.f32.mrf.mxu0
        %v736 = vpop.f32.mrf.mxu0
        %v737 = vadd.f32 %v525, %v736
        %v738 = vpop.f32.mrf.mxu0
        %739 = vmatprep.mubr.bf16.mxu0 0
        %740 = vmatmul.mubr.bf16.gmra.mxu0 %v632
        %v741 = vpop.f32.mrf.mxu0
        %v742 = vadd.f32 %v530, %v741
        %v743 = vpop.f32.mrf.mxu0
        %v744 = vpop.f32.mrf.mxu0
        %v745 = vadd.f32 %v533, %v744
        %v746 = vpop.f32.mrf.mxu0
        %747 = vmatprep.mubr.bf16.mxu0 0
        %748 = vmatmul.mubr.bf16.gmra.mxu0 %v635
        %v749 = vpop.f32.mrf.mxu0
        %v750 = vadd.f32 %v538, %v749
        %v751 = vpop.f32.mrf.mxu0
        %v752 = vpop.f32.mrf.mxu0
        %v753 = vadd.f32 %v541, %v752
        %v754 = vpop.f32.mrf.mxu0
        %755 = vmatprep.mubr.bf16.mxu0 0
        %756 = vmatmul.mubr.bf16.gmra.mxu0 %v638
        %v757 = vpop.f32.mrf.mxu0
        %v758 = vadd.f32 %v546, %v757
        %v759 = vpop.f32.mrf.mxu0
        %v760 = vpop.f32.mrf.mxu0
        %v761 = vadd.f32 %v549, %v760
        %v762 = vpop.f32.mrf.mxu0
        %763 = vmatprep.mubr.bf16.mxu0 0
        %764 = vmatmul.mubr.bf16.gmra.mxu0 %v641
        %v765 = vpop.f32.mrf.mxu0
        %v766 = vadd.f32 %v554, %v765
        %v767 = vpop.f32.mrf.mxu0
        %v768 = vpop.f32.mrf.mxu0
        %v769 = vadd.f32 %v557, %v768
        %v770 = vpop.f32.mrf.mxu0
        %771 = vmatprep.mubr.bf16.mxu0 0
        %772 = vmatmul.mubr.bf16.gmra.mxu0 %v644
        %v773 = vpop.f32.mrf.mxu0
        %v774 = vadd.f32 %v562, %v773
        %v775 = vpop.f32.mrf.mxu0
        %v776 = vpop.f32.mrf.mxu0
        %v777 = vadd.f32 %v565, %v776
        %v778 = vpop.f32.mrf.mxu0
        %779 = vmatprep.mubr.bf16.mxu0 0
        %780 = vmatmul.mubr.bf16.gmra.mxu0 %v647
        %v781 = vpop.f32.mrf.mxu0
        %v782 = vadd.f32 %v570, %v781
        %v783 = vpop.f32.mrf.mxu0
        %v784 = vpop.f32.mrf.mxu0
        %v785 = vadd.f32 %v573, %v784
        %v786 = vpop.f32.mrf.mxu0
        %787 = vmatprep.mubr.bf16.mxu0 0
        %788 = vmatmul.mubr.bf16.gmra.mxu0 %v650
        %v789 = vpop.f32.mrf.mxu0
        %v790 = vadd.f32 %v578, %v789
        %v791 = vpop.f32.mrf.mxu0
        %v792 = vpop.f32.mrf.mxu0
        %v793 = vadd.f32 %v581, %v792
        %v794 = vpop.f32.mrf.mxu0
        %795 = vmatprep.mubr.bf16.mxu0 0
        %796 = vmatmul.mubr.bf16.gmra.mxu0 %v653
        %v797 = vpop.f32.mrf.mxu0
        %v798 = vadd.f32 %v586, %v797
        %v799 = vpop.f32.mrf.mxu0
        %v800 = vpop.f32.mrf.mxu0
        %v801 = vadd.f32 %v589, %v800
        %v802 = vpop.f32.mrf.mxu0
        %803 = vmatprep.mubr.bf16.mxu0 0
        %804 = vmatmul.mubr.bf16.gmra.mxu0 %v656
        %v805 = vpop.f32.mrf.mxu0
        %v806 = vadd.f32 %v594, %v805
        %v807 = vpop.f32.mrf.mxu0
        %v808 = vpop.f32.mrf.mxu0
        %v809 = vadd.f32 %v597, %v808
        %v810 = vpop.f32.mrf.mxu0
        %811 = vmatprep.mubr.bf16.mxu0 0
        %812 = vmatmul.mubr.bf16.gmra.mxu0 %v659
        %v813 = vpop.f32.mrf.mxu0
        %v814 = vadd.f32 %v602, %v813
        %v815 = vpop.f32.mrf.mxu0
        %v816 = vpop.f32.mrf.mxu0
        %v817 = vadd.f32 %v605, %v816
        %v818 = vpop.f32.mrf.mxu0
        %819 = vmatprep.mubr.bf16.mxu0 0
        %820 = vmatmul.mubr.bf16.gmra.mxu0 %v662
        %v821 = vpop.f32.mrf.mxu0
        %v822 = vadd.f32 %v610, %v821
        %v823 = vpop.f32.mrf.mxu0
        %v824 = vpop.f32.mrf.mxu0
        %v825 = vadd.f32 %v613, %v824
        %v826 = vpop.f32.mrf.mxu0
        %827 = vdwg.mxu0
        %vm876 = vcmask 1046528
        %v877 = vrot.slane %v197, 1
        %v878 = vrot.slane %v198, 1
        %v879 = vsel %vm876, %v877, %v878
        %v880 = vrot.slane %v199, 1
        %v881 = vsel %vm876, %v878, %v880
        %v882 = vrot.slane %v200, 1
        %v883 = vrot.slane %v201, 1
        %v884 = vsel %vm876, %v882, %v883
        %v885 = vrot.slane %v202, 1
        %v886 = vsel %vm876, %v883, %v885
        %v887 = vrot.slane %v203, 1
        %v888 = vrot.slane %v204, 1
        %v889 = vsel %vm876, %v887, %v888
        %v890 = vrot.slane %v205, 1
        %v891 = vsel %vm876, %v888, %v890
        %v892 = vrot.slane %v206, 1
        %v893 = vrot.slane %v207, 1
        %v894 = vsel %vm876, %v892, %v893
        %v895 = vrot.slane %v208, 1
        %v896 = vsel %vm876, %v893, %v895
        %v897 = vrot.slane %v209, 1
        %v898 = vrot.slane %v210, 1
        %v899 = vsel %vm876, %v897, %v898
        %v900 = vrot.slane %v211, 1
        %v901 = vsel %vm876, %v898, %v900
        %v902 = vrot.slane %v212, 1
        %v903 = vrot.slane %v213, 1
        %v904 = vsel %vm876, %v902, %v903
        %v905 = vrot.slane %v214, 1
        %v906 = vsel %vm876, %v903, %v905
        %v907 = vrot.slane %v215, 1
        %v908 = vrot.slane %v216, 1
        %v909 = vsel %vm876, %v907, %v908
        %v910 = vrot.slane %v217, 1
        %v911 = vsel %vm876, %v908, %v910
        %v912 = vrot.slane %v218, 1
        %v913 = vrot.slane %v219, 1
        %v914 = vsel %vm876, %v912, %v913
        %v915 = vrot.slane %v220, 1
        %v916 = vsel %vm876, %v913, %v915
        %v917 = vrot.slane %v221, 1
        %v918 = vrot.slane %v222, 1
        %v919 = vsel %vm876, %v917, %v918
        %v920 = vrot.slane %v223, 1
        %v921 = vsel %vm876, %v918, %v920
        %v922 = vrot.slane %v224, 1
        %v923 = vrot.slane %v225, 1
        %v924 = vsel %vm876, %v922, %v923
        %v925 = vrot.slane %v226, 1
        %v926 = vsel %vm876, %v923, %v925
        %v927 = vrot.slane %v227, 1
        %v928 = vrot.slane %v228, 1
        %v929 = vsel %vm876, %v927, %v928
        %v930 = vrot.slane %v229, 1
        %v931 = vsel %vm876, %v928, %v930
        %v932 = vrot.slane %v230, 1
        %v933 = vrot.slane %v231, 1
        %v934 = vsel %vm876, %v932, %v933
        %v935 = vrot.slane %v232, 1
        %v936 = vsel %vm876, %v933, %v935
        %v937 = vrot.slane %v233, 1
        %v938 = vrot.slane %v234, 1
        %v939 = vsel %vm876, %v937, %v938
        %v940 = vrot.slane %v235, 1
        %v941 = vsel %vm876, %v938, %v940
        %v942 = vrot.slane %v236, 1
        %v943 = vrot.slane %v237, 1
        %v944 = vsel %vm876, %v942, %v943
        %v945 = vrot.slane %v238, 1
        %v946 = vsel %vm876, %v943, %v945
        %v947 = vrot.slane %v239, 1
        %v948 = vrot.slane %v240, 1
        %v949 = vsel %vm876, %v947, %v948
        %v950 = vrot.slane %v241, 1
        %v951 = vsel %vm876, %v948, %v950
        %v952 = vrot.slane %v242, 1
        %v953 = vrot.slane %v243, 1
        %v954 = vsel %vm876, %v952, %v953
        %v955 = vrot.slane %v244, 1
        %v956 = vsel %vm876, %v953, %v955
        %v989 = vpack.c.bf16 %v881, %v879
        %v990 = vpack.c.bf16 %v886, %v884
        %v991 = vpack.c.bf16 %v891, %v889
        %v992 = vpack.c.bf16 %v896, %v894
        %v993 = vpack.c.bf16 %v901, %v899
        %v994 = vpack.c.bf16 %v906, %v904
        %v995 = vpack.c.bf16 %v911, %v909
        %v996 = vpack.c.bf16 %v916, %v914
        %v997 = vpack.c.bf16 %v921, %v919
        %v998 = vpack.c.bf16 %v926, %v924
        %v999 = vpack.c.bf16 %v931, %v929
        %v1000 = vpack.c.bf16 %v936, %v934
        %v1001 = vpack.c.bf16 %v941, %v939
        %v1002 = vpack.c.bf16 %v946, %v944
        %v1003 = vpack.c.bf16 %v951, %v949
        %v1004 = vpack.c.bf16 %v956, %v954
        %s1005 = scalar_lea.vmem %s1, 8
        %v1006 = vld [vmem:[%s1005] sm:$0xf]
        %v1008 = vsel %vm402, %v989, 0
        %v1011 = vsel %vm402, %v990, 0
        %v1014 = vsel %vm402, %v991, 0
        %v1017 = vsel %vm402, %v992, 0
        %v1020 = vsel %vm402, %v993, 0
        %v1023 = vsel %vm402, %v994, 0
        %v1026 = vsel %vm402, %v995, 0
        %v1029 = vsel %vm402, %v996, 0
        %v1032 = vsel %vm402, %v997, 0
        %v1035 = vsel %vm402, %v998, 0
        %v1038 = vsel %vm402, %v999, 0
        %v1041 = vsel %vm402, %v1000, 0
        %v1044 = vsel %vm402, %v1001, 0
        %v1047 = vsel %vm402, %v1002, 0
        %v1050 = vsel %vm402, %v1003, 0
        %v1053 = vsel %vm402, %v1004, 0
        %v1056 = vsel %vm451, %v1006, 0
        %1058 = vmatprep.subr.bf16.mxu0 0
        %1059 = vmatpush1.bf16.msra.mxu0 0
        %1060 = vmatprep.subr.bf16.mxu0 0
        %1061 = vmatpush1.bf16.msra.mxu0 0
        %1062 = vmatprep.subr.bf16.mxu0 0
        %1063 = vmatpush1.bf16.msra.mxu0 0
        %1064 = vmatprep.subr.bf16.mxu0 0
        %1065 = vmatpush1.bf16.msra.mxu0 0
        %1066 = vmatprep.subr.bf16.mxu0 0
        %1067 = vmatpush1.bf16.msra.mxu0 0
        %1068 = vmatprep.subr.bf16.mxu0 0
        %1069 = vmatpush1.bf16.msra.mxu0 0
        %1070 = vmatprep.subr.bf16.mxu0 0
        %1071 = vmatpush1.bf16.msra.mxu0 0
        %1072 = vmatprep.subr.bf16.mxu0 0
        %1073 = vmatpush1.bf16.msra.mxu0 %v1056
        %1074 = vmatprep.subr.bf16.mxu0 0
        %1075 = vmatpush2.bf16.msra.mxu0 0
        %1076 = vmatprep.subr.bf16.mxu0 0
        %1077 = vmatpush2.bf16.msra.mxu0 0
        %1078 = vmatprep.subr.bf16.mxu0 0
        %1079 = vmatpush2.bf16.msra.mxu0 0
        %1080 = vmatprep.subr.bf16.mxu0 0
        %1081 = vmatpush2.bf16.msra.mxu0 0
        %1082 = vmatprep.subr.bf16.mxu0 0
        %1083 = vmatpush2.bf16.msra.mxu0 0
        %1084 = vmatprep.subr.bf16.mxu0 0
        %1085 = vmatpush2.bf16.msra.mxu0 0
        %1086 = vmatprep.subr.bf16.mxu0 0
        %1087 = vmatpush2.bf16.msra.mxu0 0
        %1088 = vmatprep.subr.bf16.mxu0 0
        %1089 = vmatpush2.bf16.msra.mxu0 0
        %1090 = vmatprep.mubr.bf16.mxu0 0
        %1091 = vmatmul.mubr.bf16.gmra.mxu0 %v1008
        %v1092 = vpop.f32.mrf.mxu0
        %v1093 = vadd.f32 0.0, %v1092
        %v1094 = vpop.f32.mrf.mxu0
        %v1095 = vpop.f32.mrf.mxu0
        %v1096 = vadd.f32 0.0, %v1095
        %v1097 = vpop.f32.mrf.mxu0
        %1098 = vmatprep.mubr.bf16.mxu0 0
        %1099 = vmatmul.mubr.bf16.gmra.mxu0 %v1011
        %v1100 = vpop.f32.mrf.mxu0
        %v1101 = vadd.f32 0.0, %v1100
        %v1102 = vpop.f32.mrf.mxu0
        %v1103 = vpop.f32.mrf.mxu0
        %v1104 = vadd.f32 0.0, %v1103
        %v1105 = vpop.f32.mrf.mxu0
        %1106 = vmatprep.mubr.bf16.mxu0 0
        %1107 = vmatmul.mubr.bf16.gmra.mxu0 %v1014
        %v1108 = vpop.f32.mrf.mxu0
        %v1109 = vadd.f32 0.0, %v1108
        %v1110 = vpop.f32.mrf.mxu0
        %v1111 = vpop.f32.mrf.mxu0
        %v1112 = vadd.f32 0.0, %v1111
        %v1113 = vpop.f32.mrf.mxu0
        %1114 = vmatprep.mubr.bf16.mxu0 0
        %1115 = vmatmul.mubr.bf16.gmra.mxu0 %v1017
        %v1116 = vpop.f32.mrf.mxu0
        %v1117 = vadd.f32 0.0, %v1116
        %v1118 = vpop.f32.mrf.mxu0
        %v1119 = vpop.f32.mrf.mxu0
        %v1120 = vadd.f32 0.0, %v1119
        %v1121 = vpop.f32.mrf.mxu0
        %1122 = vmatprep.mubr.bf16.mxu0 0
        %1123 = vmatmul.mubr.bf16.gmra.mxu0 %v1020
        %v1124 = vpop.f32.mrf.mxu0
        %v1125 = vadd.f32 0.0, %v1124
        %v1126 = vpop.f32.mrf.mxu0
        %v1127 = vpop.f32.mrf.mxu0
        %v1128 = vadd.f32 0.0, %v1127
        %v1129 = vpop.f32.mrf.mxu0
        %1130 = vmatprep.mubr.bf16.mxu0 0
        %1131 = vmatmul.mubr.bf16.gmra.mxu0 %v1023
        %v1132 = vpop.f32.mrf.mxu0
        %v1133 = vadd.f32 0.0, %v1132
        %v1134 = vpop.f32.mrf.mxu0
        %v1135 = vpop.f32.mrf.mxu0
        %v1136 = vadd.f32 0.0, %v1135
        %v1137 = vpop.f32.mrf.mxu0
        %1138 = vmatprep.mubr.bf16.mxu0 0
        %1139 = vmatmul.mubr.bf16.gmra.mxu0 %v1026
        %v1140 = vpop.f32.mrf.mxu0
        %v1141 = vadd.f32 0.0, %v1140
        %v1142 = vpop.f32.mrf.mxu0
        %v1143 = vpop.f32.mrf.mxu0
        %v1144 = vadd.f32 0.0, %v1143
        %v1145 = vpop.f32.mrf.mxu0
        %1146 = vmatprep.mubr.bf16.mxu0 0
        %1147 = vmatmul.mubr.bf16.gmra.mxu0 %v1029
        %v1148 = vpop.f32.mrf.mxu0
        %v1149 = vadd.f32 0.0, %v1148
        %v1150 = vpop.f32.mrf.mxu0
        %v1151 = vpop.f32.mrf.mxu0
        %v1152 = vadd.f32 0.0, %v1151
        %v1153 = vpop.f32.mrf.mxu0
        %1154 = vmatprep.mubr.bf16.mxu0 0
        %1155 = vmatmul.mubr.bf16.gmra.mxu0 %v1032
        %v1156 = vpop.f32.mrf.mxu0
        %v1157 = vadd.f32 0.0, %v1156
        %v1158 = vpop.f32.mrf.mxu0
        %v1159 = vpop.f32.mrf.mxu0
        %v1160 = vadd.f32 0.0, %v1159
        %v1161 = vpop.f32.mrf.mxu0
        %1162 = vmatprep.mubr.bf16.mxu0 0
        %1163 = vmatmul.mubr.bf16.gmra.mxu0 %v1035
        %v1164 = vpop.f32.mrf.mxu0
        %v1165 = vadd.f32 0.0, %v1164
        %v1166 = vpop.f32.mrf.mxu0
        %v1167 = vpop.f32.mrf.mxu0
        %v1168 = vadd.f32 0.0, %v1167
        %v1169 = vpop.f32.mrf.mxu0
        %1170 = vmatprep.mubr.bf16.mxu0 0
        %1171 = vmatmul.mubr.bf16.gmra.mxu0 %v1038
        %v1172 = vpop.f32.mrf.mxu0
        %v1173 = vadd.f32 0.0, %v1172
        %v1174 = vpop.f32.mrf.mxu0
        %v1175 = vpop.f32.mrf.mxu0
        %v1176 = vadd.f32 0.0, %v1175
        %v1177 = vpop.f32.mrf.mxu0
        %1178 = vmatprep.mubr.bf16.mxu0 0
        %1179 = vmatmul.mubr.bf16.gmra.mxu0 %v1041
        %v1180 = vpop.f32.mrf.mxu0
        %v1181 = vadd.f32 0.0, %v1180
        %v1182 = vpop.f32.mrf.mxu0
        %v1183 = vpop.f32.mrf.mxu0
        %v1184 = vadd.f32 0.0, %v1183
        %v1185 = vpop.f32.mrf.mxu0
        %1186 = vmatprep.mubr.bf16.mxu0 0
        %1187 = vmatmul.mubr.bf16.gmra.mxu0 %v1044
        %v1188 = vpop.f32.mrf.mxu0
        %v1189 = vadd.f32 0.0, %v1188
        %v1190 = vpop.f32.mrf.mxu0
        %v1191 = vpop.f32.mrf.mxu0
        %v1192 = vadd.f32 0.0, %v1191
        %v1193 = vpop.f32.mrf.mxu0
        %1194 = vmatprep.mubr.bf16.mxu0 0
        %1195 = vmatmul.mubr.bf16.gmra.mxu0 %v1047
        %v1196 = vpop.f32.mrf.mxu0
        %v1197 = vadd.f32 0.0, %v1196
        %v1198 = vpop.f32.mrf.mxu0
        %v1199 = vpop.f32.mrf.mxu0
        %v1200 = vadd.f32 0.0, %v1199
        %v1201 = vpop.f32.mrf.mxu0
        %1202 = vmatprep.mubr.bf16.mxu0 0
        %1203 = vmatmul.mubr.bf16.gmra.mxu0 %v1050
        %v1204 = vpop.f32.mrf.mxu0
        %v1205 = vadd.f32 0.0, %v1204
        %v1206 = vpop.f32.mrf.mxu0
        %v1207 = vpop.f32.mrf.mxu0
        %v1208 = vadd.f32 0.0, %v1207
        %v1209 = vpop.f32.mrf.mxu0
        %1210 = vmatprep.mubr.bf16.mxu0 0
        %1211 = vmatmul.mubr.bf16.gmra.mxu0 %v1053
        %v1212 = vpop.f32.mrf.mxu0
        %v1213 = vadd.f32 0.0, %v1212
        %v1214 = vpop.f32.mrf.mxu0
        %v1215 = vpop.f32.mrf.mxu0
        %v1216 = vadd.f32 0.0, %v1215
        %v1217 = vpop.f32.mrf.mxu0
        %1218 = vdwg.mxu0
        %v1219 = vadd.f32 %v702, %v1093
        %v1220 = vadd.f32 %v705, %v1096
        %v1221 = vadd.f32 %v710, %v1101
        %v1222 = vadd.f32 %v713, %v1104
        %v1223 = vadd.f32 %v718, %v1109
        %v1224 = vadd.f32 %v721, %v1112
        %v1225 = vadd.f32 %v726, %v1117
        %v1226 = vadd.f32 %v729, %v1120
        %v1227 = vadd.f32 %v734, %v1125
        %v1228 = vadd.f32 %v737, %v1128
        %v1229 = vadd.f32 %v742, %v1133
        %v1230 = vadd.f32 %v745, %v1136
        %v1231 = vadd.f32 %v750, %v1141
        %v1232 = vadd.f32 %v753, %v1144
        %v1233 = vadd.f32 %v758, %v1149
        %v1234 = vadd.f32 %v761, %v1152
        %v1235 = vadd.f32 %v766, %v1157
        %v1236 = vadd.f32 %v769, %v1160
        %v1237 = vadd.f32 %v774, %v1165
        %v1238 = vadd.f32 %v777, %v1168
        %v1239 = vadd.f32 %v782, %v1173
        %v1240 = vadd.f32 %v785, %v1176
        %v1241 = vadd.f32 %v790, %v1181
        %v1242 = vadd.f32 %v793, %v1184
        %v1243 = vadd.f32 %v798, %v1189
        %v1244 = vadd.f32 %v801, %v1192
        %v1245 = vadd.f32 %v806, %v1197
        %v1246 = vadd.f32 %v809, %v1200
        %v1247 = vadd.f32 %v814, %v1205
        %v1248 = vadd.f32 %v817, %v1208
        %v1249 = vadd.f32 %v822, %v1213
        %v1250 = vadd.f32 %v825, %v1216
        %v1251 = vpack.c.bf16 %v285, %v284
        %v1252 = vpack.c.bf16 %v288, %v287
        %v1253 = vpack.c.bf16 %v291, %v290
        %v1254 = vpack.c.bf16 %v294, %v293
        %v1255 = vpack.c.bf16 %v297, %v296
        %v1256 = vpack.c.bf16 %v300, %v299
        %v1257 = vpack.c.bf16 %v303, %v302
        %v1258 = vpack.c.bf16 %v306, %v305
        %v1259 = vpack.c.bf16 %v309, %v308
        %v1260 = vpack.c.bf16 %v312, %v311
        %v1261 = vpack.c.bf16 %v315, %v314
        %v1262 = vpack.c.bf16 %v318, %v317
        %v1263 = vpack.c.bf16 %v321, %v320
        %v1264 = vpack.c.bf16 %v324, %v323
        %v1265 = vpack.c.bf16 %v327, %v326
        %v1266 = vpack.c.bf16 %v330, %v329
        %s1267 = scalar_lea.vmem %s1, 12
        %v1268 = vld [vmem:[%s1267] sm:$0xf]
        %v1270 = vsel %vm402, %v1251, 0
        %v1273 = vsel %vm402, %v1252, 0
        %v1276 = vsel %vm402, %v1253, 0
        %v1279 = vsel %vm402, %v1254, 0
        %v1282 = vsel %vm402, %v1255, 0
        %v1285 = vsel %vm402, %v1256, 0
        %v1288 = vsel %vm402, %v1257, 0
        %v1291 = vsel %vm402, %v1258, 0
        %v1294 = vsel %vm402, %v1259, 0
        %v1297 = vsel %vm402, %v1260, 0
        %v1300 = vsel %vm402, %v1261, 0
        %v1303 = vsel %vm402, %v1262, 0
        %v1306 = vsel %vm402, %v1263, 0
        %v1309 = vsel %vm402, %v1264, 0
        %v1312 = vsel %vm402, %v1265, 0
        %v1315 = vsel %vm402, %v1266, 0
        %v1318 = vsel %vm451, %v1268, 0
        %1320 = vmatprep.subr.bf16.mxu0 0
        %1321 = vmatpush1.bf16.msra.mxu0 0
        %1322 = vmatprep.subr.bf16.mxu0 0
        %1323 = vmatpush1.bf16.msra.mxu0 0
        %1324 = vmatprep.subr.bf16.mxu0 0
        %1325 = vmatpush1.bf16.msra.mxu0 0
        %1326 = vmatprep.subr.bf16.mxu0 0
        %1327 = vmatpush1.bf16.msra.mxu0 0
        %1328 = vmatprep.subr.bf16.mxu0 0
        %1329 = vmatpush1.bf16.msra.mxu0 0
        %1330 = vmatprep.subr.bf16.mxu0 0
        %1331 = vmatpush1.bf16.msra.mxu0 0
        %1332 = vmatprep.subr.bf16.mxu0 0
        %1333 = vmatpush1.bf16.msra.mxu0 0
        %1334 = vmatprep.subr.bf16.mxu0 0
        %1335 = vmatpush1.bf16.msra.mxu0 %v1318
        %1336 = vmatprep.subr.bf16.mxu0 0
        %1337 = vmatpush2.bf16.msra.mxu0 0
        %1338 = vmatprep.subr.bf16.mxu0 0
        %1339 = vmatpush2.bf16.msra.mxu0 0
        %1340 = vmatprep.subr.bf16.mxu0 0
        %1341 = vmatpush2.bf16.msra.mxu0 0
        %1342 = vmatprep.subr.bf16.mxu0 0
        %1343 = vmatpush2.bf16.msra.mxu0 0
        %1344 = vmatprep.subr.bf16.mxu0 0
        %1345 = vmatpush2.bf16.msra.mxu0 0
        %1346 = vmatprep.subr.bf16.mxu0 0
        %1347 = vmatpush2.bf16.msra.mxu0 0
        %1348 = vmatprep.subr.bf16.mxu0 0
        %1349 = vmatpush2.bf16.msra.mxu0 0
        %1350 = vmatprep.subr.bf16.mxu0 0
        %1351 = vmatpush2.bf16.msra.mxu0 0
        %1352 = vmatprep.mubr.bf16.mxu0 0
        %1353 = vmatmul.mubr.bf16.gmra.mxu0 %v1270
        %v1354 = vpop.f32.mrf.mxu0
        %v1355 = vadd.f32 0.0, %v1354
        %v1356 = vpop.f32.mrf.mxu0
        %v1357 = vpop.f32.mrf.mxu0
        %v1358 = vadd.f32 0.0, %v1357
        %v1359 = vpop.f32.mrf.mxu0
        %1360 = vmatprep.mubr.bf16.mxu0 0
        %1361 = vmatmul.mubr.bf16.gmra.mxu0 %v1273
        %v1362 = vpop.f32.mrf.mxu0
        %v1363 = vadd.f32 0.0, %v1362
        %v1364 = vpop.f32.mrf.mxu0
        %v1365 = vpop.f32.mrf.mxu0
        %v1366 = vadd.f32 0.0, %v1365
        %v1367 = vpop.f32.mrf.mxu0
        %1368 = vmatprep.mubr.bf16.mxu0 0
        %1369 = vmatmul.mubr.bf16.gmra.mxu0 %v1276
        %v1370 = vpop.f32.mrf.mxu0
        %v1371 = vadd.f32 0.0, %v1370
        %v1372 = vpop.f32.mrf.mxu0
        %v1373 = vpop.f32.mrf.mxu0
        %v1374 = vadd.f32 0.0, %v1373
        %v1375 = vpop.f32.mrf.mxu0
        %1376 = vmatprep.mubr.bf16.mxu0 0
        %1377 = vmatmul.mubr.bf16.gmra.mxu0 %v1279
        %v1378 = vpop.f32.mrf.mxu0
        %v1379 = vadd.f32 0.0, %v1378
        %v1380 = vpop.f32.mrf.mxu0
        %v1381 = vpop.f32.mrf.mxu0
        %v1382 = vadd.f32 0.0, %v1381
        %v1383 = vpop.f32.mrf.mxu0
        %1384 = vmatprep.mubr.bf16.mxu0 0
        %1385 = vmatmul.mubr.bf16.gmra.mxu0 %v1282
        %v1386 = vpop.f32.mrf.mxu0
        %v1387 = vadd.f32 0.0, %v1386
        %v1388 = vpop.f32.mrf.mxu0
        %v1389 = vpop.f32.mrf.mxu0
        %v1390 = vadd.f32 0.0, %v1389
        %v1391 = vpop.f32.mrf.mxu0
        %1392 = vmatprep.mubr.bf16.mxu0 0
        %1393 = vmatmul.mubr.bf16.gmra.mxu0 %v1285
        %v1394 = vpop.f32.mrf.mxu0
        %v1395 = vadd.f32 0.0, %v1394
        %v1396 = vpop.f32.mrf.mxu0
        %v1397 = vpop.f32.mrf.mxu0
        %v1398 = vadd.f32 0.0, %v1397
        %v1399 = vpop.f32.mrf.mxu0
        %1400 = vmatprep.mubr.bf16.mxu0 0
        %1401 = vmatmul.mubr.bf16.gmra.mxu0 %v1288
        %v1402 = vpop.f32.mrf.mxu0
        %v1403 = vadd.f32 0.0, %v1402
        %v1404 = vpop.f32.mrf.mxu0
        %v1405 = vpop.f32.mrf.mxu0
        %v1406 = vadd.f32 0.0, %v1405
        %v1407 = vpop.f32.mrf.mxu0
        %1408 = vmatprep.mubr.bf16.mxu0 0
        %1409 = vmatmul.mubr.bf16.gmra.mxu0 %v1291
        %v1410 = vpop.f32.mrf.mxu0
        %v1411 = vadd.f32 0.0, %v1410
        %v1412 = vpop.f32.mrf.mxu0
        %v1413 = vpop.f32.mrf.mxu0
        %v1414 = vadd.f32 0.0, %v1413
        %v1415 = vpop.f32.mrf.mxu0
        %1416 = vmatprep.mubr.bf16.mxu0 0
        %1417 = vmatmul.mubr.bf16.gmra.mxu0 %v1294
        %v1418 = vpop.f32.mrf.mxu0
        %v1419 = vadd.f32 0.0, %v1418
        %v1420 = vpop.f32.mrf.mxu0
        %v1421 = vpop.f32.mrf.mxu0
        %v1422 = vadd.f32 0.0, %v1421
        %v1423 = vpop.f32.mrf.mxu0
        %1424 = vmatprep.mubr.bf16.mxu0 0
        %1425 = vmatmul.mubr.bf16.gmra.mxu0 %v1297
        %v1426 = vpop.f32.mrf.mxu0
        %v1427 = vadd.f32 0.0, %v1426
        %v1428 = vpop.f32.mrf.mxu0
        %v1429 = vpop.f32.mrf.mxu0
        %v1430 = vadd.f32 0.0, %v1429
        %v1431 = vpop.f32.mrf.mxu0
        %1432 = vmatprep.mubr.bf16.mxu0 0
        %1433 = vmatmul.mubr.bf16.gmra.mxu0 %v1300
        %v1434 = vpop.f32.mrf.mxu0
        %v1435 = vadd.f32 0.0, %v1434
        %v1436 = vpop.f32.mrf.mxu0
        %v1437 = vpop.f32.mrf.mxu0
        %v1438 = vadd.f32 0.0, %v1437
        %v1439 = vpop.f32.mrf.mxu0
        %1440 = vmatprep.mubr.bf16.mxu0 0
        %1441 = vmatmul.mubr.bf16.gmra.mxu0 %v1303
        %v1442 = vpop.f32.mrf.mxu0
        %v1443 = vadd.f32 0.0, %v1442
        %v1444 = vpop.f32.mrf.mxu0
        %v1445 = vpop.f32.mrf.mxu0
        %v1446 = vadd.f32 0.0, %v1445
        %v1447 = vpop.f32.mrf.mxu0
        %1448 = vmatprep.mubr.bf16.mxu0 0
        %1449 = vmatmul.mubr.bf16.gmra.mxu0 %v1306
        %v1450 = vpop.f32.mrf.mxu0
        %v1451 = vadd.f32 0.0, %v1450
        %v1452 = vpop.f32.mrf.mxu0
        %v1453 = vpop.f32.mrf.mxu0
        %v1454 = vadd.f32 0.0, %v1453
        %v1455 = vpop.f32.mrf.mxu0
        %1456 = vmatprep.mubr.bf16.mxu0 0
        %1457 = vmatmul.mubr.bf16.gmra.mxu0 %v1309
        %v1458 = vpop.f32.mrf.mxu0
        %v1459 = vadd.f32 0.0, %v1458
        %v1460 = vpop.f32.mrf.mxu0
        %v1461 = vpop.f32.mrf.mxu0
        %v1462 = vadd.f32 0.0, %v1461
        %v1463 = vpop.f32.mrf.mxu0
        %1464 = vmatprep.mubr.bf16.mxu0 0
        %1465 = vmatmul.mubr.bf16.gmra.mxu0 %v1312
        %v1466 = vpop.f32.mrf.mxu0
        %v1467 = vadd.f32 0.0, %v1466
        %v1468 = vpop.f32.mrf.mxu0
        %v1469 = vpop.f32.mrf.mxu0
        %v1470 = vadd.f32 0.0, %v1469
        %v1471 = vpop.f32.mrf.mxu0
        %1472 = vmatprep.mubr.bf16.mxu0 0
        %1473 = vmatmul.mubr.bf16.gmra.mxu0 %v1315
        %v1474 = vpop.f32.mrf.mxu0
        %v1475 = vadd.f32 0.0, %v1474
        %v1476 = vpop.f32.mrf.mxu0
        %v1477 = vpop.f32.mrf.mxu0
        %v1478 = vadd.f32 0.0, %v1477
        %v1479 = vpop.f32.mrf.mxu0
        %1480 = vdwg.mxu0
        %v1481 = vadd.f32 %v1219, %v1355
        %v1482 = vadd.f32 %v1220, %v1358
        %v1483 = vadd.f32 %v1221, %v1363
        %v1484 = vadd.f32 %v1222, %v1366
        %v1485 = vadd.f32 %v1223, %v1371
        %v1486 = vadd.f32 %v1224, %v1374
        %v1487 = vadd.f32 %v1225, %v1379
        %v1488 = vadd.f32 %v1226, %v1382
        %v1489 = vadd.f32 %v1227, %v1387
        %v1490 = vadd.f32 %v1228, %v1390
        %v1491 = vadd.f32 %v1229, %v1395
        %v1492 = vadd.f32 %v1230, %v1398
        %v1493 = vadd.f32 %v1231, %v1403
        %v1494 = vadd.f32 %v1232, %v1406
        %v1495 = vadd.f32 %v1233, %v1411
        %v1496 = vadd.f32 %v1234, %v1414
        %v1497 = vadd.f32 %v1235, %v1419
        %v1498 = vadd.f32 %v1236, %v1422
        %v1499 = vadd.f32 %v1237, %v1427
        %v1500 = vadd.f32 %v1238, %v1430
        %v1501 = vadd.f32 %v1239, %v1435
        %v1502 = vadd.f32 %v1240, %v1438
        %v1503 = vadd.f32 %v1241, %v1443
        %v1504 = vadd.f32 %v1242, %v1446
        %v1505 = vadd.f32 %v1243, %v1451
        %v1506 = vadd.f32 %v1244, %v1454
        %v1507 = vadd.f32 %v1245, %v1459
        %v1508 = vadd.f32 %v1246, %v1462
        %v1509 = vadd.f32 %v1247, %v1467
        %v1510 = vadd.f32 %v1248, %v1470
        %v1511 = vadd.f32 %v1249, %v1475
        %v1512 = vadd.f32 %v1250, %v1478
        %v1513 = vpack.c.bf16 %v334, %v333
        %v1514 = vpack.c.bf16 %v336, %v335
        %v1515 = vpack.c.bf16 %v338, %v337
        %v1516 = vpack.c.bf16 %v340, %v339
        %v1517 = vpack.c.bf16 %v342, %v341
        %v1518 = vpack.c.bf16 %v344, %v343
        %v1519 = vpack.c.bf16 %v346, %v345
        %v1520 = vpack.c.bf16 %v348, %v347
        %v1521 = vpack.c.bf16 %v350, %v349
        %v1522 = vpack.c.bf16 %v352, %v351
        %v1523 = vpack.c.bf16 %v354, %v353
        %v1524 = vpack.c.bf16 %v356, %v355
        %v1525 = vpack.c.bf16 %v358, %v357
        %v1526 = vpack.c.bf16 %v360, %v359
        %v1527 = vpack.c.bf16 %v362, %v361
        %v1528 = vpack.c.bf16 %v364, %v363
        %s1529 = scalar_lea.vmem %s1, 16
        %v1530 = vld [vmem:[%s1529] sm:$0xf]
        %v1532 = vsel %vm402, %v1513, 0
        %v1535 = vsel %vm402, %v1514, 0
        %v1538 = vsel %vm402, %v1515, 0
        %v1541 = vsel %vm402, %v1516, 0
        %v1544 = vsel %vm402, %v1517, 0
        %v1547 = vsel %vm402, %v1518, 0
        %v1550 = vsel %vm402, %v1519, 0
        %v1553 = vsel %vm402, %v1520, 0
        %v1556 = vsel %vm402, %v1521, 0
        %v1559 = vsel %vm402, %v1522, 0
        %v1562 = vsel %vm402, %v1523, 0
        %v1565 = vsel %vm402, %v1524, 0
        %v1568 = vsel %vm402, %v1525, 0
        %v1571 = vsel %vm402, %v1526, 0
        %v1574 = vsel %vm402, %v1527, 0
        %v1577 = vsel %vm402, %v1528, 0
        %v1580 = vsel %vm451, %v1530, 0
        %1582 = vmatprep.subr.bf16.mxu0 0
        %1583 = vmatpush1.bf16.msra.mxu0 0
        %1584 = vmatprep.subr.bf16.mxu0 0
        %1585 = vmatpush1.bf16.msra.mxu0 0
        %1586 = vmatprep.subr.bf16.mxu0 0
        %1587 = vmatpush1.bf16.msra.mxu0 0
        %1588 = vmatprep.subr.bf16.mxu0 0
        %1589 = vmatpush1.bf16.msra.mxu0 0
        %1590 = vmatprep.subr.bf16.mxu0 0
        %1591 = vmatpush1.bf16.msra.mxu0 0
        %1592 = vmatprep.subr.bf16.mxu0 0
        %1593 = vmatpush1.bf16.msra.mxu0 0
        %1594 = vmatprep.subr.bf16.mxu0 0
        %1595 = vmatpush1.bf16.msra.mxu0 0
        %1596 = vmatprep.subr.bf16.mxu0 0
        %1597 = vmatpush1.bf16.msra.mxu0 %v1580
        %1598 = vmatprep.subr.bf16.mxu0 0
        %1599 = vmatpush2.bf16.msra.mxu0 0
        %1600 = vmatprep.subr.bf16.mxu0 0
        %1601 = vmatpush2.bf16.msra.mxu0 0
        %1602 = vmatprep.subr.bf16.mxu0 0
        %1603 = vmatpush2.bf16.msra.mxu0 0
        %1604 = vmatprep.subr.bf16.mxu0 0
        %1605 = vmatpush2.bf16.msra.mxu0 0
        %1606 = vmatprep.subr.bf16.mxu0 0
        %1607 = vmatpush2.bf16.msra.mxu0 0
        %1608 = vmatprep.subr.bf16.mxu0 0
        %1609 = vmatpush2.bf16.msra.mxu0 0
        %1610 = vmatprep.subr.bf16.mxu0 0
        %1611 = vmatpush2.bf16.msra.mxu0 0
        %1612 = vmatprep.subr.bf16.mxu0 0
        %1613 = vmatpush2.bf16.msra.mxu0 0
        %1614 = vmatprep.mubr.bf16.mxu0 0
        %1615 = vmatmul.mubr.bf16.gmra.mxu0 %v1532
        %v1616 = vpop.f32.mrf.mxu0
        %v1617 = vadd.f32 0.0, %v1616
        %v1618 = vpop.f32.mrf.mxu0
        %v1619 = vpop.f32.mrf.mxu0
        %v1620 = vadd.f32 0.0, %v1619
        %v1621 = vpop.f32.mrf.mxu0
        %1622 = vmatprep.mubr.bf16.mxu0 0
        %1623 = vmatmul.mubr.bf16.gmra.mxu0 %v1535
        %v1624 = vpop.f32.mrf.mxu0
        %v1625 = vadd.f32 0.0, %v1624
        %v1626 = vpop.f32.mrf.mxu0
        %v1627 = vpop.f32.mrf.mxu0
        %v1628 = vadd.f32 0.0, %v1627
        %v1629 = vpop.f32.mrf.mxu0
        %1630 = vmatprep.mubr.bf16.mxu0 0
        %1631 = vmatmul.mubr.bf16.gmra.mxu0 %v1538
        %v1632 = vpop.f32.mrf.mxu0
        %v1633 = vadd.f32 0.0, %v1632
        %v1634 = vpop.f32.mrf.mxu0
        %v1635 = vpop.f32.mrf.mxu0
        %v1636 = vadd.f32 0.0, %v1635
        %v1637 = vpop.f32.mrf.mxu0
        %1638 = vmatprep.mubr.bf16.mxu0 0
        %1639 = vmatmul.mubr.bf16.gmra.mxu0 %v1541
        %v1640 = vpop.f32.mrf.mxu0
        %v1641 = vadd.f32 0.0, %v1640
        %v1642 = vpop.f32.mrf.mxu0
        %v1643 = vpop.f32.mrf.mxu0
        %v1644 = vadd.f32 0.0, %v1643
        %v1645 = vpop.f32.mrf.mxu0
        %1646 = vmatprep.mubr.bf16.mxu0 0
        %1647 = vmatmul.mubr.bf16.gmra.mxu0 %v1544
        %v1648 = vpop.f32.mrf.mxu0
        %v1649 = vadd.f32 0.0, %v1648
        %v1650 = vpop.f32.mrf.mxu0
        %v1651 = vpop.f32.mrf.mxu0
        %v1652 = vadd.f32 0.0, %v1651
        %v1653 = vpop.f32.mrf.mxu0
        %1654 = vmatprep.mubr.bf16.mxu0 0
        %1655 = vmatmul.mubr.bf16.gmra.mxu0 %v1547
        %v1656 = vpop.f32.mrf.mxu0
        %v1657 = vadd.f32 0.0, %v1656
        %v1658 = vpop.f32.mrf.mxu0
        %v1659 = vpop.f32.mrf.mxu0
        %v1660 = vadd.f32 0.0, %v1659
        %v1661 = vpop.f32.mrf.mxu0
        %1662 = vmatprep.mubr.bf16.mxu0 0
        %1663 = vmatmul.mubr.bf16.gmra.mxu0 %v1550
        %v1664 = vpop.f32.mrf.mxu0
        %v1665 = vadd.f32 0.0, %v1664
        %v1666 = vpop.f32.mrf.mxu0
        %v1667 = vpop.f32.mrf.mxu0
        %v1668 = vadd.f32 0.0, %v1667
        %v1669 = vpop.f32.mrf.mxu0
        %1670 = vmatprep.mubr.bf16.mxu0 0
        %1671 = vmatmul.mubr.bf16.gmra.mxu0 %v1553
        %v1672 = vpop.f32.mrf.mxu0
        %v1673 = vadd.f32 0.0, %v1672
        %v1674 = vpop.f32.mrf.mxu0
        %v1675 = vpop.f32.mrf.mxu0
        %v1676 = vadd.f32 0.0, %v1675
        %v1677 = vpop.f32.mrf.mxu0
        %1678 = vmatprep.mubr.bf16.mxu0 0
        %1679 = vmatmul.mubr.bf16.gmra.mxu0 %v1556
        %v1680 = vpop.f32.mrf.mxu0
        %v1681 = vadd.f32 0.0, %v1680
        %v1682 = vpop.f32.mrf.mxu0
        %v1683 = vpop.f32.mrf.mxu0
        %v1684 = vadd.f32 0.0, %v1683
        %v1685 = vpop.f32.mrf.mxu0
        %1686 = vmatprep.mubr.bf16.mxu0 0
        %1687 = vmatmul.mubr.bf16.gmra.mxu0 %v1559
        %v1688 = vpop.f32.mrf.mxu0
        %v1689 = vadd.f32 0.0, %v1688
        %v1690 = vpop.f32.mrf.mxu0
        %v1691 = vpop.f32.mrf.mxu0
        %v1692 = vadd.f32 0.0, %v1691
        %v1693 = vpop.f32.mrf.mxu0
        %1694 = vmatprep.mubr.bf16.mxu0 0
        %1695 = vmatmul.mubr.bf16.gmra.mxu0 %v1562
        %v1696 = vpop.f32.mrf.mxu0
        %v1697 = vadd.f32 0.0, %v1696
        %v1698 = vpop.f32.mrf.mxu0
        %v1699 = vpop.f32.mrf.mxu0
        %v1700 = vadd.f32 0.0, %v1699
        %v1701 = vpop.f32.mrf.mxu0
        %1702 = vmatprep.mubr.bf16.mxu0 0
        %1703 = vmatmul.mubr.bf16.gmra.mxu0 %v1565
        %v1704 = vpop.f32.mrf.mxu0
        %v1705 = vadd.f32 0.0, %v1704
        %v1706 = vpop.f32.mrf.mxu0
        %v1707 = vpop.f32.mrf.mxu0
        %v1708 = vadd.f32 0.0, %v1707
        %v1709 = vpop.f32.mrf.mxu0
        %1710 = vmatprep.mubr.bf16.mxu0 0
        %1711 = vmatmul.mubr.bf16.gmra.mxu0 %v1568
        %v1712 = vpop.f32.mrf.mxu0
        %v1713 = vadd.f32 0.0, %v1712
        %v1714 = vpop.f32.mrf.mxu0
        %v1715 = vpop.f32.mrf.mxu0
        %v1716 = vadd.f32 0.0, %v1715
        %v1717 = vpop.f32.mrf.mxu0
        %1718 = vmatprep.mubr.bf16.mxu0 0
        %1719 = vmatmul.mubr.bf16.gmra.mxu0 %v1571
        %v1720 = vpop.f32.mrf.mxu0
        %v1721 = vadd.f32 0.0, %v1720
        %v1722 = vpop.f32.mrf.mxu0
        %v1723 = vpop.f32.mrf.mxu0
        %v1724 = vadd.f32 0.0, %v1723
        %v1725 = vpop.f32.mrf.mxu0
        %1726 = vmatprep.mubr.bf16.mxu0 0
        %1727 = vmatmul.mubr.bf16.gmra.mxu0 %v1574
        %v1728 = vpop.f32.mrf.mxu0
        %v1729 = vadd.f32 0.0, %v1728
        %v1730 = vpop.f32.mrf.mxu0
        %v1731 = vpop.f32.mrf.mxu0
        %v1732 = vadd.f32 0.0, %v1731
        %v1733 = vpop.f32.mrf.mxu0
        %1734 = vmatprep.mubr.bf16.mxu0 0
        %1735 = vmatmul.mubr.bf16.gmra.mxu0 %v1577
        %v1736 = vpop.f32.mrf.mxu0
        %v1737 = vadd.f32 0.0, %v1736
        %v1738 = vpop.f32.mrf.mxu0
        %v1739 = vpop.f32.mrf.mxu0
        %v1740 = vadd.f32 0.0, %v1739
        %v1741 = vpop.f32.mrf.mxu0
        %1742 = vdwg.mxu0
        %v1743 = vadd.f32 %v1481, %v1617
        %v1744 = vadd.f32 %v1482, %v1620
        %v1745 = vadd.f32 %v1483, %v1625
        %v1746 = vadd.f32 %v1484, %v1628
        %v1747 = vadd.f32 %v1485, %v1633
        %v1748 = vadd.f32 %v1486, %v1636
        %v1749 = vadd.f32 %v1487, %v1641
        %v1750 = vadd.f32 %v1488, %v1644
        %v1751 = vadd.f32 %v1489, %v1649
        %v1752 = vadd.f32 %v1490, %v1652
        %v1753 = vadd.f32 %v1491, %v1657
        %v1754 = vadd.f32 %v1492, %v1660
        %v1755 = vadd.f32 %v1493, %v1665
        %v1756 = vadd.f32 %v1494, %v1668
        %v1757 = vadd.f32 %v1495, %v1673
        %v1758 = vadd.f32 %v1496, %v1676
        %v1759 = vadd.f32 %v1497, %v1681
        %v1760 = vadd.f32 %v1498, %v1684
        %v1761 = vadd.f32 %v1499, %v1689
        %v1762 = vadd.f32 %v1500, %v1692
        %v1763 = vadd.f32 %v1501, %v1697
        %v1764 = vadd.f32 %v1502, %v1700
        %v1765 = vadd.f32 %v1503, %v1705
        %v1766 = vadd.f32 %v1504, %v1708
        %v1767 = vadd.f32 %v1505, %v1713
        %v1768 = vadd.f32 %v1506, %v1716
        %v1769 = vadd.f32 %v1507, %v1721
        %v1770 = vadd.f32 %v1508, %v1724
        %v1771 = vadd.f32 %v1509, %v1729
        %v1772 = vadd.f32 %v1510, %v1732
        %v1773 = vadd.f32 %v1511, %v1737
        %v1774 = vadd.f32 %v1512, %v1740
        %v1823 = vrot.slane %v284, 1
        %v1824 = vrot.slane %v285, 1
        %v1825 = vsel %vm876, %v1823, %v1824
        %v1826 = vrot.slane %v286, 1
        %v1827 = vsel %vm876, %v1824, %v1826
        %v1828 = vrot.slane %v287, 1
        %v1829 = vrot.slane %v288, 1
        %v1830 = vsel %vm876, %v1828, %v1829
        %v1831 = vrot.slane %v289, 1
        %v1832 = vsel %vm876, %v1829, %v1831
        %v1833 = vrot.slane %v290, 1
        %v1834 = vrot.slane %v291, 1
        %v1835 = vsel %vm876, %v1833, %v1834
        %v1836 = vrot.slane %v292, 1
        %v1837 = vsel %vm876, %v1834, %v1836
        %v1838 = vrot.slane %v293, 1
        %v1839 = vrot.slane %v294, 1
        %v1840 = vsel %vm876, %v1838, %v1839
        %v1841 = vrot.slane %v295, 1
        %v1842 = vsel %vm876, %v1839, %v1841
        %v1843 = vrot.slane %v296, 1
        %v1844 = vrot.slane %v297, 1
        %v1845 = vsel %vm876, %v1843, %v1844
        %v1846 = vrot.slane %v298, 1
        %v1847 = vsel %vm876, %v1844, %v1846
        %v1848 = vrot.slane %v299, 1
        %v1849 = vrot.slane %v300, 1
        %v1850 = vsel %vm876, %v1848, %v1849
        %v1851 = vrot.slane %v301, 1
        %v1852 = vsel %vm876, %v1849, %v1851
        %v1853 = vrot.slane %v302, 1
        %v1854 = vrot.slane %v303, 1
        %v1855 = vsel %vm876, %v1853, %v1854
        %v1856 = vrot.slane %v304, 1
        %v1857 = vsel %vm876, %v1854, %v1856
        %v1858 = vrot.slane %v305, 1
        %v1859 = vrot.slane %v306, 1
        %v1860 = vsel %vm876, %v1858, %v1859
        %v1861 = vrot.slane %v307, 1
        %v1862 = vsel %vm876, %v1859, %v1861
        %v1863 = vrot.slane %v308, 1
        %v1864 = vrot.slane %v309, 1
        %v1865 = vsel %vm876, %v1863, %v1864
        %v1866 = vrot.slane %v310, 1
        %v1867 = vsel %vm876, %v1864, %v1866
        %v1868 = vrot.slane %v311, 1
        %v1869 = vrot.slane %v312, 1
        %v1870 = vsel %vm876, %v1868, %v1869
        %v1871 = vrot.slane %v313, 1
        %v1872 = vsel %vm876, %v1869, %v1871
        %v1873 = vrot.slane %v314, 1
        %v1874 = vrot.slane %v315, 1
        %v1875 = vsel %vm876, %v1873, %v1874
        %v1876 = vrot.slane %v316, 1
        %v1877 = vsel %vm876, %v1874, %v1876
        %v1878 = vrot.slane %v317, 1
        %v1879 = vrot.slane %v318, 1
        %v1880 = vsel %vm876, %v1878, %v1879
        %v1881 = vrot.slane %v319, 1
        %v1882 = vsel %vm876, %v1879, %v1881
        %v1883 = vrot.slane %v320, 1
        %v1884 = vrot.slane %v321, 1
        %v1885 = vsel %vm876, %v1883, %v1884
        %v1886 = vrot.slane %v322, 1
        %v1887 = vsel %vm876, %v1884, %v1886
        %v1888 = vrot.slane %v323, 1
        %v1889 = vrot.slane %v324, 1
        %v1890 = vsel %vm876, %v1888, %v1889
        %v1891 = vrot.slane %v325, 1
        %v1892 = vsel %vm876, %v1889, %v1891
        %v1893 = vrot.slane %v326, 1
        %v1894 = vrot.slane %v327, 1
        %v1895 = vsel %vm876, %v1893, %v1894
        %v1896 = vrot.slane %v328, 1
        %v1897 = vsel %vm876, %v1894, %v1896
        %v1898 = vrot.slane %v329, 1
        %v1899 = vrot.slane %v330, 1
        %v1900 = vsel %vm876, %v1898, %v1899
        %v1901 = vrot.slane %v331, 1
        %v1902 = vsel %vm876, %v1899, %v1901
        %v1935 = vpack.c.bf16 %v1827, %v1825
        %v1936 = vpack.c.bf16 %v1832, %v1830
        %v1937 = vpack.c.bf16 %v1837, %v1835
        %v1938 = vpack.c.bf16 %v1842, %v1840
        %v1939 = vpack.c.bf16 %v1847, %v1845
        %v1940 = vpack.c.bf16 %v1852, %v1850
        %v1941 = vpack.c.bf16 %v1857, %v1855
        %v1942 = vpack.c.bf16 %v1862, %v1860
        %v1943 = vpack.c.bf16 %v1867, %v1865
        %v1944 = vpack.c.bf16 %v1872, %v1870
        %v1945 = vpack.c.bf16 %v1877, %v1875
        %v1946 = vpack.c.bf16 %v1882, %v1880
        %v1947 = vpack.c.bf16 %v1887, %v1885
        %v1948 = vpack.c.bf16 %v1892, %v1890
        %v1949 = vpack.c.bf16 %v1897, %v1895
        %v1950 = vpack.c.bf16 %v1902, %v1900
        %s1951 = scalar_lea.vmem %s1, 20
        %v1952 = vld [vmem:[%s1951] sm:$0xf]
        %v1954 = vsel %vm402, %v1935, 0
        %v1957 = vsel %vm402, %v1936, 0
        %v1960 = vsel %vm402, %v1937, 0
        %v1963 = vsel %vm402, %v1938, 0
        %v1966 = vsel %vm402, %v1939, 0
        %v1969 = vsel %vm402, %v1940, 0
        %v1972 = vsel %vm402, %v1941, 0
        %v1975 = vsel %vm402, %v1942, 0
        %v1978 = vsel %vm402, %v1943, 0
        %v1981 = vsel %vm402, %v1944, 0
        %v1984 = vsel %vm402, %v1945, 0
        %v1987 = vsel %vm402, %v1946, 0
        %v1990 = vsel %vm402, %v1947, 0
        %v1993 = vsel %vm402, %v1948, 0
        %v1996 = vsel %vm402, %v1949, 0
        %v1999 = vsel %vm402, %v1950, 0
        %v2002 = vsel %vm451, %v1952, 0
        %2004 = vmatprep.subr.bf16.mxu0 0
        %2005 = vmatpush1.bf16.msra.mxu0 0
        %2006 = vmatprep.subr.bf16.mxu0 0
        %2007 = vmatpush1.bf16.msra.mxu0 0
        %2008 = vmatprep.subr.bf16.mxu0 0
        %2009 = vmatpush1.bf16.msra.mxu0 0
        %2010 = vmatprep.subr.bf16.mxu0 0
        %2011 = vmatpush1.bf16.msra.mxu0 0
        %2012 = vmatprep.subr.bf16.mxu0 0
        %2013 = vmatpush1.bf16.msra.mxu0 0
        %2014 = vmatprep.subr.bf16.mxu0 0
        %2015 = vmatpush1.bf16.msra.mxu0 0
        %2016 = vmatprep.subr.bf16.mxu0 0
        %2017 = vmatpush1.bf16.msra.mxu0 0
        %2018 = vmatprep.subr.bf16.mxu0 0
        %2019 = vmatpush1.bf16.msra.mxu0 %v2002
        %2020 = vmatprep.subr.bf16.mxu0 0
        %2021 = vmatpush2.bf16.msra.mxu0 0
        %2022 = vmatprep.subr.bf16.mxu0 0
        %2023 = vmatpush2.bf16.msra.mxu0 0
        %2024 = vmatprep.subr.bf16.mxu0 0
        %2025 = vmatpush2.bf16.msra.mxu0 0
        %2026 = vmatprep.subr.bf16.mxu0 0
        %2027 = vmatpush2.bf16.msra.mxu0 0
        %2028 = vmatprep.subr.bf16.mxu0 0
        %2029 = vmatpush2.bf16.msra.mxu0 0
        %2030 = vmatprep.subr.bf16.mxu0 0
        %2031 = vmatpush2.bf16.msra.mxu0 0
        %2032 = vmatprep.subr.bf16.mxu0 0
        %2033 = vmatpush2.bf16.msra.mxu0 0
        %2034 = vmatprep.subr.bf16.mxu0 0
        %2035 = vmatpush2.bf16.msra.mxu0 0
        %2036 = vmatprep.mubr.bf16.mxu0 0
        %2037 = vmatmul.mubr.bf16.gmra.mxu0 %v1954
        %v2038 = vpop.f32.mrf.mxu0
        %v2039 = vadd.f32 0.0, %v2038
        %v2040 = vpop.f32.mrf.mxu0
        %v2041 = vpop.f32.mrf.mxu0
        %v2042 = vadd.f32 0.0, %v2041
        %v2043 = vpop.f32.mrf.mxu0
        %2044 = vmatprep.mubr.bf16.mxu0 0
        %2045 = vmatmul.mubr.bf16.gmra.mxu0 %v1957
        %v2046 = vpop.f32.mrf.mxu0
        %v2047 = vadd.f32 0.0, %v2046
        %v2048 = vpop.f32.mrf.mxu0
        %v2049 = vpop.f32.mrf.mxu0
        %v2050 = vadd.f32 0.0, %v2049
        %v2051 = vpop.f32.mrf.mxu0
        %2052 = vmatprep.mubr.bf16.mxu0 0
        %2053 = vmatmul.mubr.bf16.gmra.mxu0 %v1960
        %v2054 = vpop.f32.mrf.mxu0
        %v2055 = vadd.f32 0.0, %v2054
        %v2056 = vpop.f32.mrf.mxu0
        %v2057 = vpop.f32.mrf.mxu0
        %v2058 = vadd.f32 0.0, %v2057
        %v2059 = vpop.f32.mrf.mxu0
        %2060 = vmatprep.mubr.bf16.mxu0 0
        %2061 = vmatmul.mubr.bf16.gmra.mxu0 %v1963
        %v2062 = vpop.f32.mrf.mxu0
        %v2063 = vadd.f32 0.0, %v2062
        %v2064 = vpop.f32.mrf.mxu0
        %v2065 = vpop.f32.mrf.mxu0
        %v2066 = vadd.f32 0.0, %v2065
        %v2067 = vpop.f32.mrf.mxu0
        %2068 = vmatprep.mubr.bf16.mxu0 0
        %2069 = vmatmul.mubr.bf16.gmra.mxu0 %v1966
        %v2070 = vpop.f32.mrf.mxu0
        %v2071 = vadd.f32 0.0, %v2070
        %v2072 = vpop.f32.mrf.mxu0
        %v2073 = vpop.f32.mrf.mxu0
        %v2074 = vadd.f32 0.0, %v2073
        %v2075 = vpop.f32.mrf.mxu0
        %2076 = vmatprep.mubr.bf16.mxu0 0
        %2077 = vmatmul.mubr.bf16.gmra.mxu0 %v1969
        %v2078 = vpop.f32.mrf.mxu0
        %v2079 = vadd.f32 0.0, %v2078
        %v2080 = vpop.f32.mrf.mxu0
        %v2081 = vpop.f32.mrf.mxu0
        %v2082 = vadd.f32 0.0, %v2081
        %v2083 = vpop.f32.mrf.mxu0
        %2084 = vmatprep.mubr.bf16.mxu0 0
        %2085 = vmatmul.mubr.bf16.gmra.mxu0 %v1972
        %v2086 = vpop.f32.mrf.mxu0
        %v2087 = vadd.f32 0.0, %v2086
        %v2088 = vpop.f32.mrf.mxu0
        %v2089 = vpop.f32.mrf.mxu0
        %v2090 = vadd.f32 0.0, %v2089
        %v2091 = vpop.f32.mrf.mxu0
        %2092 = vmatprep.mubr.bf16.mxu0 0
        %2093 = vmatmul.mubr.bf16.gmra.mxu0 %v1975
        %v2094 = vpop.f32.mrf.mxu0
        %v2095 = vadd.f32 0.0, %v2094
        %v2096 = vpop.f32.mrf.mxu0
        %v2097 = vpop.f32.mrf.mxu0
        %v2098 = vadd.f32 0.0, %v2097
        %v2099 = vpop.f32.mrf.mxu0
        %2100 = vmatprep.mubr.bf16.mxu0 0
        %2101 = vmatmul.mubr.bf16.gmra.mxu0 %v1978
        %v2102 = vpop.f32.mrf.mxu0
        %v2103 = vadd.f32 0.0, %v2102
        %v2104 = vpop.f32.mrf.mxu0
        %v2105 = vpop.f32.mrf.mxu0
        %v2106 = vadd.f32 0.0, %v2105
        %v2107 = vpop.f32.mrf.mxu0
        %2108 = vmatprep.mubr.bf16.mxu0 0
        %2109 = vmatmul.mubr.bf16.gmra.mxu0 %v1981
        %v2110 = vpop.f32.mrf.mxu0
        %v2111 = vadd.f32 0.0, %v2110
        %v2112 = vpop.f32.mrf.mxu0
        %v2113 = vpop.f32.mrf.mxu0
        %v2114 = vadd.f32 0.0, %v2113
        %v2115 = vpop.f32.mrf.mxu0
        %2116 = vmatprep.mubr.bf16.mxu0 0
        %2117 = vmatmul.mubr.bf16.gmra.mxu0 %v1984
        %v2118 = vpop.f32.mrf.mxu0
        %v2119 = vadd.f32 0.0, %v2118
        %v2120 = vpop.f32.mrf.mxu0
        %v2121 = vpop.f32.mrf.mxu0
        %v2122 = vadd.f32 0.0, %v2121
        %v2123 = vpop.f32.mrf.mxu0
        %2124 = vmatprep.mubr.bf16.mxu0 0
        %2125 = vmatmul.mubr.bf16.gmra.mxu0 %v1987
        %v2126 = vpop.f32.mrf.mxu0
        %v2127 = vadd.f32 0.0, %v2126
        %v2128 = vpop.f32.mrf.mxu0
        %v2129 = vpop.f32.mrf.mxu0
        %v2130 = vadd.f32 0.0, %v2129
        %v2131 = vpop.f32.mrf.mxu0
        %2132 = vmatprep.mubr.bf16.mxu0 0
        %2133 = vmatmul.mubr.bf16.gmra.mxu0 %v1990
        %v2134 = vpop.f32.mrf.mxu0
        %v2135 = vadd.f32 0.0, %v2134
        %v2136 = vpop.f32.mrf.mxu0
        %v2137 = vpop.f32.mrf.mxu0
        %v2138 = vadd.f32 0.0, %v2137
        %v2139 = vpop.f32.mrf.mxu0
        %2140 = vmatprep.mubr.bf16.mxu0 0
        %2141 = vmatmul.mubr.bf16.gmra.mxu0 %v1993
        %v2142 = vpop.f32.mrf.mxu0
        %v2143 = vadd.f32 0.0, %v2142
        %v2144 = vpop.f32.mrf.mxu0
        %v2145 = vpop.f32.mrf.mxu0
        %v2146 = vadd.f32 0.0, %v2145
        %v2147 = vpop.f32.mrf.mxu0
        %2148 = vmatprep.mubr.bf16.mxu0 0
        %2149 = vmatmul.mubr.bf16.gmra.mxu0 %v1996
        %v2150 = vpop.f32.mrf.mxu0
        %v2151 = vadd.f32 0.0, %v2150
        %v2152 = vpop.f32.mrf.mxu0
        %v2153 = vpop.f32.mrf.mxu0
        %v2154 = vadd.f32 0.0, %v2153
        %v2155 = vpop.f32.mrf.mxu0
        %2156 = vmatprep.mubr.bf16.mxu0 0
        %2157 = vmatmul.mubr.bf16.gmra.mxu0 %v1999
        %v2158 = vpop.f32.mrf.mxu0
        %v2159 = vadd.f32 0.0, %v2158
        %v2160 = vpop.f32.mrf.mxu0
        %v2161 = vpop.f32.mrf.mxu0
        %v2162 = vadd.f32 0.0, %v2161
        %v2163 = vpop.f32.mrf.mxu0
        %2164 = vdwg.mxu0
        %v2165 = vadd.f32 %v1743, %v2039
        %v2166 = vadd.f32 %v1744, %v2042
        %v2167 = vadd.f32 %v1745, %v2047
        %v2168 = vadd.f32 %v1746, %v2050
        %v2169 = vadd.f32 %v1747, %v2055
        %v2170 = vadd.f32 %v1748, %v2058
        %v2171 = vadd.f32 %v1749, %v2063
        %v2172 = vadd.f32 %v1750, %v2066
        %v2173 = vadd.f32 %v1751, %v2071
        %v2174 = vadd.f32 %v1752, %v2074
        %v2175 = vadd.f32 %v1753, %v2079
        %v2176 = vadd.f32 %v1754, %v2082
        %v2177 = vadd.f32 %v1755, %v2087
        %v2178 = vadd.f32 %v1756, %v2090
        %v2179 = vadd.f32 %v1757, %v2095
        %v2180 = vadd.f32 %v1758, %v2098
        %v2181 = vadd.f32 %v1759, %v2103
        %v2182 = vadd.f32 %v1760, %v2106
        %v2183 = vadd.f32 %v1761, %v2111
        %v2184 = vadd.f32 %v1762, %v2114
        %v2185 = vadd.f32 %v1763, %v2119
        %v2186 = vadd.f32 %v1764, %v2122
        %v2187 = vadd.f32 %v1765, %v2127
        %v2188 = vadd.f32 %v1766, %v2130
        %v2189 = vadd.f32 %v1767, %v2135
        %v2190 = vadd.f32 %v1768, %v2138
        %v2191 = vadd.f32 %v1769, %v2143
        %v2192 = vadd.f32 %v1770, %v2146
        %v2193 = vadd.f32 %v1771, %v2151
        %v2194 = vadd.f32 %v1772, %v2154
        %v2195 = vadd.f32 %v1773, %v2159
        %v2196 = vadd.f32 %v1774, %v2162
        %v2197 = vpack.c.bf16 %v246, %v245
        %s2198 = scalar_lea.vmem %s1, 24
        %v2199 = vld [vmem:[%s2198] sm:$0xf]
        %v2201 = vsel %vm402, %v2197, 0
        %v2204 = vsel %vm451, %v2199, 0
        %2206 = vmatprep.subr.bf16.mxu0 0
        %2207 = vmatpush1.bf16.msra.mxu0 0
        %2208 = vmatprep.subr.bf16.mxu0 0
        %2209 = vmatpush1.bf16.msra.mxu0 0
        %2210 = vmatprep.subr.bf16.mxu0 0
        %2211 = vmatpush1.bf16.msra.mxu0 0
        %2212 = vmatprep.subr.bf16.mxu0 0
        %2213 = vmatpush1.bf16.msra.mxu0 0
        %2214 = vmatprep.subr.bf16.mxu0 0
        %2215 = vmatpush1.bf16.msra.mxu0 0
        %2216 = vmatprep.subr.bf16.mxu0 0
        %2217 = vmatpush1.bf16.msra.mxu0 0
        %2218 = vmatprep.subr.bf16.mxu0 0
        %2219 = vmatpush1.bf16.msra.mxu0 0
        %2220 = vmatprep.subr.bf16.mxu0 0
        %2221 = vmatpush1.bf16.msra.mxu0 %v2204
        %2222 = vmatprep.subr.bf16.mxu0 0
        %2223 = vmatpush2.bf16.msra.mxu0 0
        %2224 = vmatprep.subr.bf16.mxu0 0
        %2225 = vmatpush2.bf16.msra.mxu0 0
        %2226 = vmatprep.subr.bf16.mxu0 0
        %2227 = vmatpush2.bf16.msra.mxu0 0
        %2228 = vmatprep.subr.bf16.mxu0 0
        %2229 = vmatpush2.bf16.msra.mxu0 0
        %2230 = vmatprep.subr.bf16.mxu0 0
        %2231 = vmatpush2.bf16.msra.mxu0 0
        %2232 = vmatprep.subr.bf16.mxu0 0
        %2233 = vmatpush2.bf16.msra.mxu0 0
        %2234 = vmatprep.subr.bf16.mxu0 0
        %2235 = vmatpush2.bf16.msra.mxu0 0
        %2236 = vmatprep.subr.bf16.mxu0 0
        %2237 = vmatpush2.bf16.msra.mxu0 0
        %2238 = vmatprep.mubr.bf16.mxu0 0
        %2239 = vmatmul.mubr.bf16.gmra.mxu0 %v620
        %v2240 = vpop.f32.mrf.mxu0
        %v2241 = vadd.f32 0.0, %v2240
        %v2242 = vpop.f32.mrf.mxu0
        %v2243 = vpop.f32.mrf.mxu0
        %v2244 = vadd.f32 0.0, %v2243
        %v2245 = vpop.f32.mrf.mxu0
        %2246 = vmatprep.mubr.bf16.mxu0 0
        %2247 = vmatmul.mubr.bf16.gmra.mxu0 %v623
        %v2248 = vpop.f32.mrf.mxu0
        %v2249 = vadd.f32 0.0, %v2248
        %v2250 = vpop.f32.mrf.mxu0
        %v2251 = vpop.f32.mrf.mxu0
        %v2252 = vadd.f32 0.0, %v2251
        %v2253 = vpop.f32.mrf.mxu0
        %2254 = vmatprep.mubr.bf16.mxu0 0
        %2255 = vmatmul.mubr.bf16.gmra.mxu0 %v626
        %v2256 = vpop.f32.mrf.mxu0
        %v2257 = vadd.f32 0.0, %v2256
        %v2258 = vpop.f32.mrf.mxu0
        %v2259 = vpop.f32.mrf.mxu0
        %v2260 = vadd.f32 0.0, %v2259
        %v2261 = vpop.f32.mrf.mxu0
        %2262 = vmatprep.mubr.bf16.mxu0 0
        %2263 = vmatmul.mubr.bf16.gmra.mxu0 %v629
        %v2264 = vpop.f32.mrf.mxu0
        %v2265 = vadd.f32 0.0, %v2264
        %v2266 = vpop.f32.mrf.mxu0
        %v2267 = vpop.f32.mrf.mxu0
        %v2268 = vadd.f32 0.0, %v2267
        %v2269 = vpop.f32.mrf.mxu0
        %2270 = vmatprep.mubr.bf16.mxu0 0
        %2271 = vmatmul.mubr.bf16.gmra.mxu0 %v632
        %v2272 = vpop.f32.mrf.mxu0
        %v2273 = vadd.f32 0.0, %v2272
        %v2274 = vpop.f32.mrf.mxu0
        %v2275 = vpop.f32.mrf.mxu0
        %v2276 = vadd.f32 0.0, %v2275
        %v2277 = vpop.f32.mrf.mxu0
        %2278 = vmatprep.mubr.bf16.mxu0 0
        %2279 = vmatmul.mubr.bf16.gmra.mxu0 %v635
        %v2280 = vpop.f32.mrf.mxu0
        %v2281 = vadd.f32 0.0, %v2280
        %v2282 = vpop.f32.mrf.mxu0
        %v2283 = vpop.f32.mrf.mxu0
        %v2284 = vadd.f32 0.0, %v2283
        %v2285 = vpop.f32.mrf.mxu0
        %2286 = vmatprep.mubr.bf16.mxu0 0
        %2287 = vmatmul.mubr.bf16.gmra.mxu0 %v638
        %v2288 = vpop.f32.mrf.mxu0
        %v2289 = vadd.f32 0.0, %v2288
        %v2290 = vpop.f32.mrf.mxu0
        %v2291 = vpop.f32.mrf.mxu0
        %v2292 = vadd.f32 0.0, %v2291
        %v2293 = vpop.f32.mrf.mxu0
        %2294 = vmatprep.mubr.bf16.mxu0 0
        %2295 = vmatmul.mubr.bf16.gmra.mxu0 %v641
        %v2296 = vpop.f32.mrf.mxu0
        %v2297 = vadd.f32 0.0, %v2296
        %v2298 = vpop.f32.mrf.mxu0
        %v2299 = vpop.f32.mrf.mxu0
        %v2300 = vadd.f32 0.0, %v2299
        %v2301 = vpop.f32.mrf.mxu0
        %2302 = vmatprep.mubr.bf16.mxu0 0
        %2303 = vmatmul.mubr.bf16.gmra.mxu0 %v644
        %v2304 = vpop.f32.mrf.mxu0
        %v2305 = vadd.f32 0.0, %v2304
        %v2306 = vpop.f32.mrf.mxu0
        %v2307 = vpop.f32.mrf.mxu0
        %v2308 = vadd.f32 0.0, %v2307
        %v2309 = vpop.f32.mrf.mxu0
        %2310 = vmatprep.mubr.bf16.mxu0 0
        %2311 = vmatmul.mubr.bf16.gmra.mxu0 %v647
        %v2312 = vpop.f32.mrf.mxu0
        %v2313 = vadd.f32 0.0, %v2312
        %v2314 = vpop.f32.mrf.mxu0
        %v2315 = vpop.f32.mrf.mxu0
        %v2316 = vadd.f32 0.0, %v2315
        %v2317 = vpop.f32.mrf.mxu0
        %2318 = vmatprep.mubr.bf16.mxu0 0
        %2319 = vmatmul.mubr.bf16.gmra.mxu0 %v650
        %v2320 = vpop.f32.mrf.mxu0
        %v2321 = vadd.f32 0.0, %v2320
        %v2322 = vpop.f32.mrf.mxu0
        %v2323 = vpop.f32.mrf.mxu0
        %v2324 = vadd.f32 0.0, %v2323
        %v2325 = vpop.f32.mrf.mxu0
        %2326 = vmatprep.mubr.bf16.mxu0 0
        %2327 = vmatmul.mubr.bf16.gmra.mxu0 %v653
        %v2328 = vpop.f32.mrf.mxu0
        %v2329 = vadd.f32 0.0, %v2328
        %v2330 = vpop.f32.mrf.mxu0
        %v2331 = vpop.f32.mrf.mxu0
        %v2332 = vadd.f32 0.0, %v2331
        %v2333 = vpop.f32.mrf.mxu0
        %2334 = vmatprep.mubr.bf16.mxu0 0
        %2335 = vmatmul.mubr.bf16.gmra.mxu0 %v656
        %v2336 = vpop.f32.mrf.mxu0
        %v2337 = vadd.f32 0.0, %v2336
        %v2338 = vpop.f32.mrf.mxu0
        %v2339 = vpop.f32.mrf.mxu0
        %v2340 = vadd.f32 0.0, %v2339
        %v2341 = vpop.f32.mrf.mxu0
        %2342 = vmatprep.mubr.bf16.mxu0 0
        %2343 = vmatmul.mubr.bf16.gmra.mxu0 %v659
        %v2344 = vpop.f32.mrf.mxu0
        %v2345 = vadd.f32 0.0, %v2344
        %v2346 = vpop.f32.mrf.mxu0
        %v2347 = vpop.f32.mrf.mxu0
        %v2348 = vadd.f32 0.0, %v2347
        %v2349 = vpop.f32.mrf.mxu0
        %2350 = vmatprep.mubr.bf16.mxu0 0
        %2351 = vmatmul.mubr.bf16.gmra.mxu0 %v662
        %v2352 = vpop.f32.mrf.mxu0
        %v2353 = vadd.f32 0.0, %v2352
        %v2354 = vpop.f32.mrf.mxu0
        %v2355 = vpop.f32.mrf.mxu0
        %v2356 = vadd.f32 0.0, %v2355
        %v2357 = vpop.f32.mrf.mxu0
        %2358 = vmatprep.mubr.bf16.mxu0 0
        %2359 = vmatmul.mubr.bf16.gmra.mxu0 %v2201
        %v2360 = vpop.f32.mrf.mxu0
        %v2361 = vadd.f32 0.0, %v2360
        %v2362 = vpop.f32.mrf.mxu0
        %v2363 = vpop.f32.mrf.mxu0
        %v2364 = vadd.f32 0.0, %v2363
        %v2365 = vpop.f32.mrf.mxu0
        %2366 = vdwg.mxu0
        %v2367 = vadd.f32 %v2165, %v2241
        %v2368 = vadd.f32 %v2166, %v2244
        %v2369 = vadd.f32 %v2167, %v2249
        %v2370 = vadd.f32 %v2168, %v2252
        %v2371 = vadd.f32 %v2169, %v2257
        %v2372 = vadd.f32 %v2170, %v2260
        %v2373 = vadd.f32 %v2171, %v2265
        %v2374 = vadd.f32 %v2172, %v2268
        %v2375 = vadd.f32 %v2173, %v2273
        %v2376 = vadd.f32 %v2174, %v2276
        %v2377 = vadd.f32 %v2175, %v2281
        %v2378 = vadd.f32 %v2176, %v2284
        %v2379 = vadd.f32 %v2177, %v2289
        %v2380 = vadd.f32 %v2178, %v2292
        %v2381 = vadd.f32 %v2179, %v2297
        %v2382 = vadd.f32 %v2180, %v2300
        %v2383 = vadd.f32 %v2181, %v2305
        %v2384 = vadd.f32 %v2182, %v2308
        %v2385 = vadd.f32 %v2183, %v2313
        %v2386 = vadd.f32 %v2184, %v2316
        %v2387 = vadd.f32 %v2185, %v2321
        %v2388 = vadd.f32 %v2186, %v2324
        %v2389 = vadd.f32 %v2187, %v2329
        %v2390 = vadd.f32 %v2188, %v2332
        %v2391 = vadd.f32 %v2189, %v2337
        %v2392 = vadd.f32 %v2190, %v2340
        %v2393 = vadd.f32 %v2191, %v2345
        %v2394 = vadd.f32 %v2192, %v2348
        %v2395 = vadd.f32 %v2193, %v2353
        %v2396 = vadd.f32 %v2194, %v2356
        %v2397 = vadd.f32 %v2195, %v2361
        %v2398 = vadd.f32 %v2196, %v2364
        %v2399 = vpack.c.bf16 %v282, %v281
        %s2400 = scalar_lea.vmem %s1, 28
        %v2401 = vld [vmem:[%s2400] sm:$0xf]
        %v2403 = vsel %vm402, %v2399, 0
        %v2406 = vsel %vm451, %v2401, 0
        %2408 = vmatprep.subr.bf16.mxu0 0
        %2409 = vmatpush1.bf16.msra.mxu0 0
        %2410 = vmatprep.subr.bf16.mxu0 0
        %2411 = vmatpush1.bf16.msra.mxu0 0
        %2412 = vmatprep.subr.bf16.mxu0 0
        %2413 = vmatpush1.bf16.msra.mxu0 0
        %2414 = vmatprep.subr.bf16.mxu0 0
        %2415 = vmatpush1.bf16.msra.mxu0 0
        %2416 = vmatprep.subr.bf16.mxu0 0
        %2417 = vmatpush1.bf16.msra.mxu0 0
        %2418 = vmatprep.subr.bf16.mxu0 0
        %2419 = vmatpush1.bf16.msra.mxu0 0
        %2420 = vmatprep.subr.bf16.mxu0 0
        %2421 = vmatpush1.bf16.msra.mxu0 0
        %2422 = vmatprep.subr.bf16.mxu0 0
        %2423 = vmatpush1.bf16.msra.mxu0 %v2406
        %2424 = vmatprep.subr.bf16.mxu0 0
        %2425 = vmatpush2.bf16.msra.mxu0 0
        %2426 = vmatprep.subr.bf16.mxu0 0
        %2427 = vmatpush2.bf16.msra.mxu0 0
        %2428 = vmatprep.subr.bf16.mxu0 0
        %2429 = vmatpush2.bf16.msra.mxu0 0
        %2430 = vmatprep.subr.bf16.mxu0 0
        %2431 = vmatpush2.bf16.msra.mxu0 0
        %2432 = vmatprep.subr.bf16.mxu0 0
        %2433 = vmatpush2.bf16.msra.mxu0 0
        %2434 = vmatprep.subr.bf16.mxu0 0
        %2435 = vmatpush2.bf16.msra.mxu0 0
        %2436 = vmatprep.subr.bf16.mxu0 0
        %2437 = vmatpush2.bf16.msra.mxu0 0
        %2438 = vmatprep.subr.bf16.mxu0 0
        %2439 = vmatpush2.bf16.msra.mxu0 0
        %2440 = vmatprep.mubr.bf16.mxu0 0
        %2441 = vmatmul.mubr.bf16.gmra.mxu0 %v407
        %v2442 = vpop.f32.mrf.mxu0
        %v2443 = vadd.f32 0.0, %v2442
        %v2444 = vpop.f32.mrf.mxu0
        %v2445 = vpop.f32.mrf.mxu0
        %v2446 = vadd.f32 0.0, %v2445
        %v2447 = vpop.f32.mrf.mxu0
        %2448 = vmatprep.mubr.bf16.mxu0 0
        %2449 = vmatmul.mubr.bf16.gmra.mxu0 %v410
        %v2450 = vpop.f32.mrf.mxu0
        %v2451 = vadd.f32 0.0, %v2450
        %v2452 = vpop.f32.mrf.mxu0
        %v2453 = vpop.f32.mrf.mxu0
        %v2454 = vadd.f32 0.0, %v2453
        %v2455 = vpop.f32.mrf.mxu0
        %2456 = vmatprep.mubr.bf16.mxu0 0
        %2457 = vmatmul.mubr.bf16.gmra.mxu0 %v413
        %v2458 = vpop.f32.mrf.mxu0
        %v2459 = vadd.f32 0.0, %v2458
        %v2460 = vpop.f32.mrf.mxu0
        %v2461 = vpop.f32.mrf.mxu0
        %v2462 = vadd.f32 0.0, %v2461
        %v2463 = vpop.f32.mrf.mxu0
        %2464 = vmatprep.mubr.bf16.mxu0 0
        %2465 = vmatmul.mubr.bf16.gmra.mxu0 %v416
        %v2466 = vpop.f32.mrf.mxu0
        %v2467 = vadd.f32 0.0, %v2466
        %v2468 = vpop.f32.mrf.mxu0
        %v2469 = vpop.f32.mrf.mxu0
        %v2470 = vadd.f32 0.0, %v2469
        %v2471 = vpop.f32.mrf.mxu0
        %2472 = vmatprep.mubr.bf16.mxu0 0
        %2473 = vmatmul.mubr.bf16.gmra.mxu0 %v419
        %v2474 = vpop.f32.mrf.mxu0
        %v2475 = vadd.f32 0.0, %v2474
        %v2476 = vpop.f32.mrf.mxu0
        %v2477 = vpop.f32.mrf.mxu0
        %v2478 = vadd.f32 0.0, %v2477
        %v2479 = vpop.f32.mrf.mxu0
        %2480 = vmatprep.mubr.bf16.mxu0 0
        %2481 = vmatmul.mubr.bf16.gmra.mxu0 %v422
        %v2482 = vpop.f32.mrf.mxu0
        %v2483 = vadd.f32 0.0, %v2482
        %v2484 = vpop.f32.mrf.mxu0
        %v2485 = vpop.f32.mrf.mxu0
        %v2486 = vadd.f32 0.0, %v2485
        %v2487 = vpop.f32.mrf.mxu0
        %2488 = vmatprep.mubr.bf16.mxu0 0
        %2489 = vmatmul.mubr.bf16.gmra.mxu0 %v425
        %v2490 = vpop.f32.mrf.mxu0
        %v2491 = vadd.f32 0.0, %v2490
        %v2492 = vpop.f32.mrf.mxu0
        %v2493 = vpop.f32.mrf.mxu0
        %v2494 = vadd.f32 0.0, %v2493
        %v2495 = vpop.f32.mrf.mxu0
        %2496 = vmatprep.mubr.bf16.mxu0 0
        %2497 = vmatmul.mubr.bf16.gmra.mxu0 %v428
        %v2498 = vpop.f32.mrf.mxu0
        %v2499 = vadd.f32 0.0, %v2498
        %v2500 = vpop.f32.mrf.mxu0
        %v2501 = vpop.f32.mrf.mxu0
        %v2502 = vadd.f32 0.0, %v2501
        %v2503 = vpop.f32.mrf.mxu0
        %2504 = vmatprep.mubr.bf16.mxu0 0
        %2505 = vmatmul.mubr.bf16.gmra.mxu0 %v431
        %v2506 = vpop.f32.mrf.mxu0
        %v2507 = vadd.f32 0.0, %v2506
        %v2508 = vpop.f32.mrf.mxu0
        %v2509 = vpop.f32.mrf.mxu0
        %v2510 = vadd.f32 0.0, %v2509
        %v2511 = vpop.f32.mrf.mxu0
        %2512 = vmatprep.mubr.bf16.mxu0 0
        %2513 = vmatmul.mubr.bf16.gmra.mxu0 %v434
        %v2514 = vpop.f32.mrf.mxu0
        %v2515 = vadd.f32 0.0, %v2514
        %v2516 = vpop.f32.mrf.mxu0
        %v2517 = vpop.f32.mrf.mxu0
        %v2518 = vadd.f32 0.0, %v2517
        %v2519 = vpop.f32.mrf.mxu0
        %2520 = vmatprep.mubr.bf16.mxu0 0
        %2521 = vmatmul.mubr.bf16.gmra.mxu0 %v437
        %v2522 = vpop.f32.mrf.mxu0
        %v2523 = vadd.f32 0.0, %v2522
        %v2524 = vpop.f32.mrf.mxu0
        %v2525 = vpop.f32.mrf.mxu0
        %v2526 = vadd.f32 0.0, %v2525
        %v2527 = vpop.f32.mrf.mxu0
        %2528 = vmatprep.mubr.bf16.mxu0 0
        %2529 = vmatmul.mubr.bf16.gmra.mxu0 %v440
        %v2530 = vpop.f32.mrf.mxu0
        %v2531 = vadd.f32 0.0, %v2530
        %v2532 = vpop.f32.mrf.mxu0
        %v2533 = vpop.f32.mrf.mxu0
        %v2534 = vadd.f32 0.0, %v2533
        %v2535 = vpop.f32.mrf.mxu0
        %2536 = vmatprep.mubr.bf16.mxu0 0
        %2537 = vmatmul.mubr.bf16.gmra.mxu0 %v443
        %v2538 = vpop.f32.mrf.mxu0
        %v2539 = vadd.f32 0.0, %v2538
        %v2540 = vpop.f32.mrf.mxu0
        %v2541 = vpop.f32.mrf.mxu0
        %v2542 = vadd.f32 0.0, %v2541
        %v2543 = vpop.f32.mrf.mxu0
        %2544 = vmatprep.mubr.bf16.mxu0 0
        %2545 = vmatmul.mubr.bf16.gmra.mxu0 %v446
        %v2546 = vpop.f32.mrf.mxu0
        %v2547 = vadd.f32 0.0, %v2546
        %v2548 = vpop.f32.mrf.mxu0
        %v2549 = vpop.f32.mrf.mxu0
        %v2550 = vadd.f32 0.0, %v2549
        %v2551 = vpop.f32.mrf.mxu0
        %2552 = vmatprep.mubr.bf16.mxu0 0
        %2553 = vmatmul.mubr.bf16.gmra.mxu0 %v449
        %v2554 = vpop.f32.mrf.mxu0
        %v2555 = vadd.f32 0.0, %v2554
        %v2556 = vpop.f32.mrf.mxu0
        %v2557 = vpop.f32.mrf.mxu0
        %v2558 = vadd.f32 0.0, %v2557
        %v2559 = vpop.f32.mrf.mxu0
        %2560 = vmatprep.mubr.bf16.mxu0 0
        %2561 = vmatmul.mubr.bf16.gmra.mxu0 %v2403
        %v2562 = vpop.f32.mrf.mxu0
        %v2563 = vadd.f32 0.0, %v2562
        %v2564 = vpop.f32.mrf.mxu0
        %v2565 = vpop.f32.mrf.mxu0
        %v2566 = vadd.f32 0.0, %v2565
        %v2567 = vpop.f32.mrf.mxu0
        %2568 = vdwg.mxu0
        %v2569 = vadd.f32 %v2367, %v2443
        %v2570 = vadd.f32 %v2368, %v2446
        %v2571 = vadd.f32 %v2369, %v2451
        %v2572 = vadd.f32 %v2370, %v2454
        %v2573 = vadd.f32 %v2371, %v2459
        %v2574 = vadd.f32 %v2372, %v2462
        %v2575 = vadd.f32 %v2373, %v2467
        %v2576 = vadd.f32 %v2374, %v2470
        %v2577 = vadd.f32 %v2375, %v2475
        %v2578 = vadd.f32 %v2376, %v2478
        %v2579 = vadd.f32 %v2377, %v2483
        %v2580 = vadd.f32 %v2378, %v2486
        %v2581 = vadd.f32 %v2379, %v2491
        %v2582 = vadd.f32 %v2380, %v2494
        %v2583 = vadd.f32 %v2381, %v2499
        %v2584 = vadd.f32 %v2382, %v2502
        %v2585 = vadd.f32 %v2383, %v2507
        %v2586 = vadd.f32 %v2384, %v2510
        %v2587 = vadd.f32 %v2385, %v2515
        %v2588 = vadd.f32 %v2386, %v2518
        %v2589 = vadd.f32 %v2387, %v2523
        %v2590 = vadd.f32 %v2388, %v2526
        %v2591 = vadd.f32 %v2389, %v2531
        %v2592 = vadd.f32 %v2390, %v2534
        %v2593 = vadd.f32 %v2391, %v2539
        %v2594 = vadd.f32 %v2392, %v2542
        %v2595 = vadd.f32 %v2393, %v2547
        %v2596 = vadd.f32 %v2394, %v2550
        %v2597 = vadd.f32 %v2395, %v2555
        %v2598 = vadd.f32 %v2396, %v2558
        %v2599 = vadd.f32 %v2397, %v2563
        %v2600 = vadd.f32 %v2398, %v2566
        %v2604 = vrot.slane %v245, 1
        %v2605 = vrot.slane %v246, 1
        %v2606 = vsel %vm876, %v2604, %v2605
        %v2607 = vrot.slane %v247, 1
        %v2608 = vsel %vm876, %v2605, %v2607
        %v2611 = vpack.c.bf16 %v2608, %v2606
        %s2612 = scalar_lea.vmem %s1, 32
        %v2613 = vld [vmem:[%s2612] sm:$0xf]
        %v2615 = vsel %vm402, %v2611, 0
        %v2618 = vsel %vm451, %v2613, 0
        %2620 = vmatprep.subr.bf16.mxu0 0
        %2621 = vmatpush1.bf16.msra.mxu0 0
        %2622 = vmatprep.subr.bf16.mxu0 0
        %2623 = vmatpush1.bf16.msra.mxu0 0
        %2624 = vmatprep.subr.bf16.mxu0 0
        %2625 = vmatpush1.bf16.msra.mxu0 0
        %2626 = vmatprep.subr.bf16.mxu0 0
        %2627 = vmatpush1.bf16.msra.mxu0 0
        %2628 = vmatprep.subr.bf16.mxu0 0
        %2629 = vmatpush1.bf16.msra.mxu0 0
        %2630 = vmatprep.subr.bf16.mxu0 0
        %2631 = vmatpush1.bf16.msra.mxu0 0
        %2632 = vmatprep.subr.bf16.mxu0 0
        %2633 = vmatpush1.bf16.msra.mxu0 0
        %2634 = vmatprep.subr.bf16.mxu0 0
        %2635 = vmatpush1.bf16.msra.mxu0 %v2618
        %2636 = vmatprep.subr.bf16.mxu0 0
        %2637 = vmatpush2.bf16.msra.mxu0 0
        %2638 = vmatprep.subr.bf16.mxu0 0
        %2639 = vmatpush2.bf16.msra.mxu0 0
        %2640 = vmatprep.subr.bf16.mxu0 0
        %2641 = vmatpush2.bf16.msra.mxu0 0
        %2642 = vmatprep.subr.bf16.mxu0 0
        %2643 = vmatpush2.bf16.msra.mxu0 0
        %2644 = vmatprep.subr.bf16.mxu0 0
        %2645 = vmatpush2.bf16.msra.mxu0 0
        %2646 = vmatprep.subr.bf16.mxu0 0
        %2647 = vmatpush2.bf16.msra.mxu0 0
        %2648 = vmatprep.subr.bf16.mxu0 0
        %2649 = vmatpush2.bf16.msra.mxu0 0
        %2650 = vmatprep.subr.bf16.mxu0 0
        %2651 = vmatpush2.bf16.msra.mxu0 0
        %2652 = vmatprep.mubr.bf16.mxu0 0
        %2653 = vmatmul.mubr.bf16.gmra.mxu0 %v1011
        %v2654 = vpop.f32.mrf.mxu0
        %v2655 = vadd.f32 0.0, %v2654
        %v2656 = vpop.f32.mrf.mxu0
        %v2657 = vpop.f32.mrf.mxu0
        %v2658 = vadd.f32 0.0, %v2657
        %v2659 = vpop.f32.mrf.mxu0
        %2660 = vmatprep.mubr.bf16.mxu0 0
        %2661 = vmatmul.mubr.bf16.gmra.mxu0 %v1014
        %v2662 = vpop.f32.mrf.mxu0
        %v2663 = vadd.f32 0.0, %v2662
        %v2664 = vpop.f32.mrf.mxu0
        %v2665 = vpop.f32.mrf.mxu0
        %v2666 = vadd.f32 0.0, %v2665
        %v2667 = vpop.f32.mrf.mxu0
        %2668 = vmatprep.mubr.bf16.mxu0 0
        %2669 = vmatmul.mubr.bf16.gmra.mxu0 %v1017
        %v2670 = vpop.f32.mrf.mxu0
        %v2671 = vadd.f32 0.0, %v2670
        %v2672 = vpop.f32.mrf.mxu0
        %v2673 = vpop.f32.mrf.mxu0
        %v2674 = vadd.f32 0.0, %v2673
        %v2675 = vpop.f32.mrf.mxu0
        %2676 = vmatprep.mubr.bf16.mxu0 0
        %2677 = vmatmul.mubr.bf16.gmra.mxu0 %v1020
        %v2678 = vpop.f32.mrf.mxu0
        %v2679 = vadd.f32 0.0, %v2678
        %v2680 = vpop.f32.mrf.mxu0
        %v2681 = vpop.f32.mrf.mxu0
        %v2682 = vadd.f32 0.0, %v2681
        %v2683 = vpop.f32.mrf.mxu0
        %2684 = vmatprep.mubr.bf16.mxu0 0
        %2685 = vmatmul.mubr.bf16.gmra.mxu0 %v1023
        %v2686 = vpop.f32.mrf.mxu0
        %v2687 = vadd.f32 0.0, %v2686
        %v2688 = vpop.f32.mrf.mxu0
        %v2689 = vpop.f32.mrf.mxu0
        %v2690 = vadd.f32 0.0, %v2689
        %v2691 = vpop.f32.mrf.mxu0
        %2692 = vmatprep.mubr.bf16.mxu0 0
        %2693 = vmatmul.mubr.bf16.gmra.mxu0 %v1026
        %v2694 = vpop.f32.mrf.mxu0
        %v2695 = vadd.f32 0.0, %v2694
        %v2696 = vpop.f32.mrf.mxu0
        %v2697 = vpop.f32.mrf.mxu0
        %v2698 = vadd.f32 0.0, %v2697
        %v2699 = vpop.f32.mrf.mxu0
        %2700 = vmatprep.mubr.bf16.mxu0 0
        %2701 = vmatmul.mubr.bf16.gmra.mxu0 %v1029
        %v2702 = vpop.f32.mrf.mxu0
        %v2703 = vadd.f32 0.0, %v2702
        %v2704 = vpop.f32.mrf.mxu0
        %v2705 = vpop.f32.mrf.mxu0
        %v2706 = vadd.f32 0.0, %v2705
        %v2707 = vpop.f32.mrf.mxu0
        %2708 = vmatprep.mubr.bf16.mxu0 0
        %2709 = vmatmul.mubr.bf16.gmra.mxu0 %v1032
        %v2710 = vpop.f32.mrf.mxu0
        %v2711 = vadd.f32 0.0, %v2710
        %v2712 = vpop.f32.mrf.mxu0
        %v2713 = vpop.f32.mrf.mxu0
        %v2714 = vadd.f32 0.0, %v2713
        %v2715 = vpop.f32.mrf.mxu0
        %2716 = vmatprep.mubr.bf16.mxu0 0
        %2717 = vmatmul.mubr.bf16.gmra.mxu0 %v1035
        %v2718 = vpop.f32.mrf.mxu0
        %v2719 = vadd.f32 0.0, %v2718
        %v2720 = vpop.f32.mrf.mxu0
        %v2721 = vpop.f32.mrf.mxu0
        %v2722 = vadd.f32 0.0, %v2721
        %v2723 = vpop.f32.mrf.mxu0
        %2724 = vmatprep.mubr.bf16.mxu0 0
        %2725 = vmatmul.mubr.bf16.gmra.mxu0 %v1038
        %v2726 = vpop.f32.mrf.mxu0
        %v2727 = vadd.f32 0.0, %v2726
        %v2728 = vpop.f32.mrf.mxu0
        %v2729 = vpop.f32.mrf.mxu0
        %v2730 = vadd.f32 0.0, %v2729
        %v2731 = vpop.f32.mrf.mxu0
        %2732 = vmatprep.mubr.bf16.mxu0 0
        %2733 = vmatmul.mubr.bf16.gmra.mxu0 %v1041
        %v2734 = vpop.f32.mrf.mxu0
        %v2735 = vadd.f32 0.0, %v2734
        %v2736 = vpop.f32.mrf.mxu0
        %v2737 = vpop.f32.mrf.mxu0
        %v2738 = vadd.f32 0.0, %v2737
        %v2739 = vpop.f32.mrf.mxu0
        %2740 = vmatprep.mubr.bf16.mxu0 0
        %2741 = vmatmul.mubr.bf16.gmra.mxu0 %v1044
        %v2742 = vpop.f32.mrf.mxu0
        %v2743 = vadd.f32 0.0, %v2742
        %v2744 = vpop.f32.mrf.mxu0
        %v2745 = vpop.f32.mrf.mxu0
        %v2746 = vadd.f32 0.0, %v2745
        %v2747 = vpop.f32.mrf.mxu0
        %2748 = vmatprep.mubr.bf16.mxu0 0
        %2749 = vmatmul.mubr.bf16.gmra.mxu0 %v1047
        %v2750 = vpop.f32.mrf.mxu0
        %v2751 = vadd.f32 0.0, %v2750
        %v2752 = vpop.f32.mrf.mxu0
        %v2753 = vpop.f32.mrf.mxu0
        %v2754 = vadd.f32 0.0, %v2753
        %v2755 = vpop.f32.mrf.mxu0
        %2756 = vmatprep.mubr.bf16.mxu0 0
        %2757 = vmatmul.mubr.bf16.gmra.mxu0 %v1050
        %v2758 = vpop.f32.mrf.mxu0
        %v2759 = vadd.f32 0.0, %v2758
        %v2760 = vpop.f32.mrf.mxu0
        %v2761 = vpop.f32.mrf.mxu0
        %v2762 = vadd.f32 0.0, %v2761
        %v2763 = vpop.f32.mrf.mxu0
        %2764 = vmatprep.mubr.bf16.mxu0 0
        %2765 = vmatmul.mubr.bf16.gmra.mxu0 %v1053
        %v2766 = vpop.f32.mrf.mxu0
        %v2767 = vadd.f32 0.0, %v2766
        %v2768 = vpop.f32.mrf.mxu0
        %v2769 = vpop.f32.mrf.mxu0
        %v2770 = vadd.f32 0.0, %v2769
        %v2771 = vpop.f32.mrf.mxu0
        %2772 = vmatprep.mubr.bf16.mxu0 0
        %2773 = vmatmul.mubr.bf16.gmra.mxu0 %v2615
        %v2774 = vpop.f32.mrf.mxu0
        %v2775 = vadd.f32 0.0, %v2774
        %v2776 = vpop.f32.mrf.mxu0
        %v2777 = vpop.f32.mrf.mxu0
        %v2778 = vadd.f32 0.0, %v2777
        %v2779 = vpop.f32.mrf.mxu0
        %2780 = vdwg.mxu0
        %v2781 = vadd.f32 %v2569, %v2655
        %v2782 = vadd.f32 %v2570, %v2658
        %v2783 = vadd.f32 %v2571, %v2663
        %v2784 = vadd.f32 %v2572, %v2666
        %v2785 = vadd.f32 %v2573, %v2671
        %v2786 = vadd.f32 %v2574, %v2674
        %v2787 = vadd.f32 %v2575, %v2679
        %v2788 = vadd.f32 %v2576, %v2682
        %v2789 = vadd.f32 %v2577, %v2687
        %v2790 = vadd.f32 %v2578, %v2690
        %v2791 = vadd.f32 %v2579, %v2695
        %v2792 = vadd.f32 %v2580, %v2698
        %v2793 = vadd.f32 %v2581, %v2703
        %v2794 = vadd.f32 %v2582, %v2706
        %v2795 = vadd.f32 %v2583, %v2711
        %v2796 = vadd.f32 %v2584, %v2714
        %v2797 = vadd.f32 %v2585, %v2719
        %v2798 = vadd.f32 %v2586, %v2722
        %v2799 = vadd.f32 %v2587, %v2727
        %v2800 = vadd.f32 %v2588, %v2730
        %v2801 = vadd.f32 %v2589, %v2735
        %v2802 = vadd.f32 %v2590, %v2738
        %v2803 = vadd.f32 %v2591, %v2743
        %v2804 = vadd.f32 %v2592, %v2746
        %v2805 = vadd.f32 %v2593, %v2751
        %v2806 = vadd.f32 %v2594, %v2754
        %v2807 = vadd.f32 %v2595, %v2759
        %v2808 = vadd.f32 %v2596, %v2762
        %v2809 = vadd.f32 %v2597, %v2767
        %v2810 = vadd.f32 %v2598, %v2770
        %v2811 = vadd.f32 %v2599, %v2775
        %v2812 = vadd.f32 %v2600, %v2778
        %v2814 = vlaneseq
        %v2815 = vshrl.u32 %v2814, 7
        %v2816 = vsub.s32 0, %v2815
        %v2817 = vrot.slane %v365, %v2816
        %v2819 = vmul.f32 %v2781, %v2817
        %v2820 = vmul.f32 %v2782, %v2817
        %v2821 = vmul.f32 %v2783, %v2817
        %v2822 = vmul.f32 %v2784, %v2817
        %v2823 = vmul.f32 %v2785, %v2817
        %v2824 = vmul.f32 %v2786, %v2817
        %v2825 = vmul.f32 %v2787, %v2817
        %v2826 = vmul.f32 %v2788, %v2817
        %v2827 = vmul.f32 %v2789, %v2817
        %v2828 = vmul.f32 %v2790, %v2817
        %v2829 = vmul.f32 %v2791, %v2817
        %v2830 = vmul.f32 %v2792, %v2817
        %v2831 = vmul.f32 %v2793, %v2817
        %v2832 = vmul.f32 %v2794, %v2817
        %v2833 = vmul.f32 %v2795, %v2817
        %v2834 = vmul.f32 %v2796, %v2817
        %v2835 = vmul.f32 %v2797, %v2817
        %v2836 = vmul.f32 %v2798, %v2817
        %v2837 = vmul.f32 %v2799, %v2817
        %v2838 = vmul.f32 %v2800, %v2817
        %v2839 = vmul.f32 %v2801, %v2817
        %v2840 = vmul.f32 %v2802, %v2817
        %v2841 = vmul.f32 %v2803, %v2817
        %v2842 = vmul.f32 %v2804, %v2817
        %v2843 = vmul.f32 %v2805, %v2817
        %v2844 = vmul.f32 %v2806, %v2817
        %v2845 = vmul.f32 %v2807, %v2817
        %v2846 = vmul.f32 %v2808, %v2817
        %v2847 = vmul.f32 %v2809, %v2817
        %v2848 = vmul.f32 %v2810, %v2817
        %v2849 = vmul.f32 %v2811, %v2817
        %v2850 = vmul.f32 %v2812, %v2817
        %v2852 = vlaneseq
        %v2853 = vshrl.u32 %v2852, 7
        %v2854 = vsub.s32 0, %v2853
        %v2855 = vrot.slane %v366, %v2854
        %v2857 = vadd.f32 %v2819, %v2855
        %v2858 = vadd.f32 %v2820, %v2855
        %v2859 = vadd.f32 %v2821, %v2855
        %v2860 = vadd.f32 %v2822, %v2855
        %v2861 = vadd.f32 %v2823, %v2855
        %v2862 = vadd.f32 %v2824, %v2855
        %v2863 = vadd.f32 %v2825, %v2855
        %v2864 = vadd.f32 %v2826, %v2855
        %v2865 = vadd.f32 %v2827, %v2855
        %v2866 = vadd.f32 %v2828, %v2855
        %v2867 = vadd.f32 %v2829, %v2855
        %v2868 = vadd.f32 %v2830, %v2855
        %v2869 = vadd.f32 %v2831, %v2855
        %v2870 = vadd.f32 %v2832, %v2855
        %v2871 = vadd.f32 %v2833, %v2855
        %v2872 = vadd.f32 %v2834, %v2855
        %v2873 = vadd.f32 %v2835, %v2855
        %v2874 = vadd.f32 %v2836, %v2855
        %v2875 = vadd.f32 %v2837, %v2855
        %v2876 = vadd.f32 %v2838, %v2855
        %v2877 = vadd.f32 %v2839, %v2855
        %v2878 = vadd.f32 %v2840, %v2855
        %v2879 = vadd.f32 %v2841, %v2855
        %v2880 = vadd.f32 %v2842, %v2855
        %v2881 = vadd.f32 %v2843, %v2855
        %v2882 = vadd.f32 %v2844, %v2855
        %v2883 = vadd.f32 %v2845, %v2855
        %v2884 = vadd.f32 %v2846, %v2855
        %v2885 = vadd.f32 %v2847, %v2855
        %v2886 = vadd.f32 %v2848, %v2855
        %v2887 = vadd.f32 %v2849, %v2855
        %v2888 = vadd.f32 %v2850, %v2855
        %v2889 = vmax.f32 %v2857, 0.0
        %v2890 = vmax.f32 %v2858, 0.0
        %v2891 = vmax.f32 %v2859, 0.0
        %v2892 = vmax.f32 %v2860, 0.0
        %v2893 = vmax.f32 %v2861, 0.0
        %v2894 = vmax.f32 %v2862, 0.0
        %v2895 = vmax.f32 %v2863, 0.0
        %v2896 = vmax.f32 %v2864, 0.0
        %v2897 = vmax.f32 %v2865, 0.0
        %v2898 = vmax.f32 %v2866, 0.0
        %v2899 = vmax.f32 %v2867, 0.0
        %v2900 = vmax.f32 %v2868, 0.0
        %v2901 = vmax.f32 %v2869, 0.0
        %v2902 = vmax.f32 %v2870, 0.0
        %v2903 = vmax.f32 %v2871, 0.0
        %v2904 = vmax.f32 %v2872, 0.0
        %v2905 = vmax.f32 %v2873, 0.0
        %v2906 = vmax.f32 %v2874, 0.0
        %v2907 = vmax.f32 %v2875, 0.0
        %v2908 = vmax.f32 %v2876, 0.0
        %v2909 = vmax.f32 %v2877, 0.0
        %v2910 = vmax.f32 %v2878, 0.0
        %v2911 = vmax.f32 %v2879, 0.0
        %v2912 = vmax.f32 %v2880, 0.0
        %v2913 = vmax.f32 %v2881, 0.0
        %v2914 = vmax.f32 %v2882, 0.0
        %v2915 = vmax.f32 %v2883, 0.0
        %v2916 = vmax.f32 %v2884, 0.0
        %v2917 = vmax.f32 %v2885, 0.0
        %v2918 = vmax.f32 %v2886, 0.0
        %v2919 = vmax.f32 %v2887, 0.0
        %v2920 = vmax.f32 %v2888, 0.0
        %2921 = vst [vmem:[%s190] sm:$0xff] %v2889
        %2922 = vst [vmem:[%s190 + $0x8] sm:$0xff] %v2890
        %2923 = vst [vmem:[%s190 + $0x10] sm:$0xff] %v2891
        %2924 = vst [vmem:[%s190 + $0x18] sm:$0xff] %v2892
        %2925 = vst [vmem:[%s190 + $0x20] sm:$0xff] %v2893
        %2926 = vst [vmem:[%s190 + $0x28] sm:$0xff] %v2894
        %2927 = vst [vmem:[%s190 + $0x30] sm:$0xff] %v2895
        %2928 = vst [vmem:[%s190 + $0x38] sm:$0xff] %v2896
        %2929 = vst [vmem:[%s190 + $0x40] sm:$0xff] %v2897
        %2930 = vst [vmem:[%s190 + $0x48] sm:$0xff] %v2898
        %2931 = vst [vmem:[%s190 + $0x50] sm:$0xff] %v2899
        %2932 = vst [vmem:[%s190 + $0x58] sm:$0xff] %v2900
        %2933 = vst [vmem:[%s190 + $0x60] sm:$0xff] %v2901
        %2934 = vst [vmem:[%s190 + $0x68] sm:$0xff] %v2902
        %2935 = vst [vmem:[%s190 + $0x70] sm:$0xff] %v2903
        %2936 = vst [vmem:[%s190 + $0x78] sm:$0xff] %v2904
        %2937 = vst [vmem:[%s190 + $0x80] sm:$0xff] %v2905
        %2938 = vst [vmem:[%s190 + $0x88] sm:$0xff] %v2906
        %2939 = vst [vmem:[%s190 + $0x90] sm:$0xff] %v2907
        %2940 = vst [vmem:[%s190 + $0x98] sm:$0xff] %v2908
        %2941 = vst [vmem:[%s190 + $0xa0] sm:$0xff] %v2909
        %2942 = vst [vmem:[%s190 + $0xa8] sm:$0xff] %v2910
        %2943 = vst [vmem:[%s190 + $0xb0] sm:$0xff] %v2911
        %2944 = vst [vmem:[%s190 + $0xb8] sm:$0xff] %v2912
        %2945 = vst [vmem:[%s190 + $0xc0] sm:$0xff] %v2913
        %2946 = vst [vmem:[%s190 + $0xc8] sm:$0xff] %v2914
        %2947 = vst [vmem:[%s190 + $0xd0] sm:$0xff] %v2915
        %2948 = vst [vmem:[%s190 + $0xd8] sm:$0xff] %v2916
        %2949 = vst [vmem:[%s190 + $0xe0] sm:$0xff] %v2917
        %2950 = vst [vmem:[%s190 + $0xe8] sm:$0xff] %v2918
        %2951 = vst [vmem:[%s190 + $0xf0] sm:$0xff] %v2919
        %2952 = vst [vmem:[%s190 + $0xf8] sm:$0xff] %v2920
        %s2953 = sand.u32 %s115, 1
        %s2954 = scalar_lea.sflag [#allocation3], %s2953
        %s2955 = sand.u32 %s115, 1
        %s2956 = smul.addr %s2955, 256
        %s2957 = scalar_lea.vmem [#allocation2], %s2956
        // Predicated region
        $region37: #{tpu_custom_call.1} parent=35 // pred_check
          %p2958 = pneg %p125
        $region38: #{tpu_custom_call.1} parent=35 // pred_check_branch
          %2960 = sbr.rel (%p2958) target = $region40
        $region39: #{tpu_custom_call.1} parent=35 // pred_region
          %s2962 = ssub.s32 4096, 4096
          %2963 = vsyncadd %s2954, %s2962
          %s2964 = smul.addr %s18, 32
          %s2965 = smul.addr %s2964, 128
          %s2966 = scalar_lea.hbm %s4, %s2965
          %s2967 = sshll.u32 %s2957, 4
          %s2968 = int_to_ptr.vmem [resolvable:$true] %s2967
          %2973 = dma.vmem_to_hbm [thread:$0]  %s2968, 4096, %s2966, %s2954, 128, 128, 8
        $region40: #{tpu_custom_call.1} parent=35 // pred_fallthru
          _
      $region36: #{tpu_custom_call.1} parent=5 // pred_fallthru
        _
      %p2974 = scmp.le.s32.totalorder 2, %s13
      // Predicated region
      $region41: #{tpu_custom_call.1} parent=5 // pred_check
        %p2975 = pneg %p2974
      $region42: #{tpu_custom_call.1} parent=5 // pred_check_branch
        %2977 = sbr.rel (%p2975) target = $region44
      $region43: #{tpu_custom_call.1} parent=5 // pred_region
        %s2978 = ssub.s32 %s13, 2
        // Predicated region
        $region45: #{tpu_custom_call.1} parent=43 // pred_check
          %p2979 = pneg %p131
        $region46: #{tpu_custom_call.1} parent=43 // pred_check_branch
          %2981 = sbr.rel (%p2979) target = $region48
        $region47: #{tpu_custom_call.1} parent=43 // pred_region
          %s2982 = sand.u32 %s116, 1
          %s2983 = scalar_lea.sflag [#allocation3], %s2982
          %s2984 = sand.u32 %s116, 1
          %s2985 = smul.addr %s2984, 256
          %s2986 = scalar_lea.vmem [#allocation2], %s2985
          %2987 = dma.done %s2983, 4096
        $region48: #{tpu_custom_call.1} parent=43 // pred_fallthru
          _
      $region44: #{tpu_custom_call.1} parent=5 // pred_fallthru
        _
    $region6: #{tpu_custom_call.1} parent=1 // loop_footer
      %s17 = sadd.s32 1, %s13
    $region7: #{tpu_custom_call.1} parent=1 // loop_footer_branch
      %12 = sbr.rel target = $region3
    $region8: #{tpu_custom_call.1} parent=1 // loop_exit
      _
    %2988 = vsyncpa [#allocation3], 1
    %s2989 = scalar_lea.sflag [#allocation3], 1
    %2990 = vsyncpa %s2989, 1

</llo_original>
